<compile_context>
chip_gen: v6e
topology: v6e:2x2x1
jax: 0.10.0
libtpu: 0.0.40
codegen_flags: <defaults>
</compile_context>

<pallas_src>
import math

import jax
import jax.numpy as jnp
import numpy as np
from jax import lax
from jax.experimental import pallas as pl
from jax.experimental.pallas import tpu as pltpu


def lstm_kernel(x_ref, mask_ref, maskrep_ref, wih_ref, whh_ref, b_ref, wc_ref, bc_ref,
                xout_ref, yout_ref):
    BT, H = x_ref.shape          # (B*T, H)
    B, T = mask_ref.shape        # (B, T)

    whh = whh_ref[...]           # (H, 4H)  W_hh^T, i/f/o columns pre-scaled by 0.5
    wc = wc_ref[...]             # (1, H)   classifier weight row

    # ---- input projection hoisted out of the recurrence: ONE MXU pass + ONE bias add ----
    xw = jnp.dot(x_ref[...], wih_ref[...], preferred_element_type=jnp.float32) + b_ref[...]
    xw = xw.reshape(B, T, 4 * H)                       # layout-natural sublane split

    h = jnp.zeros((B, H), jnp.float32)
    c = jnp.zeros((B, H), jnp.float32)
    hs = []

    # Fully-unrolled serial recurrence (T is a small static Python int). Per step the critical
    # path is: one (B,H)x(H,4H) MXU pass, one full-vreg tanh (sigmoid folded in via pre-scaled
    # weights), tanh(c), and a handful of VALU ops. Gate order [i, f, g, o] (PyTorch).
    for t in range(T):
        gates = xw[:, t, :] + jnp.dot(h, whh, preferred_element_type=jnp.float32)   # (B, 4H)
        tg = jnp.tanh(gates)                           # single EUP push over the whole vreg
        i_g = 0.5 * tg[:, 0 * H:1 * H] + 0.5           # == sigmoid(pre_i)
        f_g = 0.5 * tg[:, 1 * H:2 * H] + 0.5           # == sigmoid(pre_f)
        g_g = tg[:, 2 * H:3 * H]                       # == tanh(pre_g)  (column not pre-scaled)
        o_g = 0.5 * tg[:, 3 * H:4 * H] + 0.5           # == sigmoid(pre_o)
        c = f_g * c + i_g * g_g
        h = o_g * jnp.tanh(c)
        hs.append(h)

    # ---- epilogue: batched, off the serial chain ----
    h2d = jnp.concatenate(hs, axis=1)                  # (B, T*H)  minor-dim concat (in registers)
    xout_ref[...] = h2d * maskrep_ref[...]             # one full-vreg mask mul + one lane-dense store

    # Classifier + sigmoid as VPU multiply + XLU lane-reduce (no N=1 MXU matmul, no lane-1 stores).
    cols = [jnp.sum(hs[t] * wc, axis=-1, keepdims=True) for t in range(T)]           # each (B, 1)
    logits = jnp.concatenate(cols, axis=1) * mask_ref[...] + bc_ref[...]              # (B, T)
    yout_ref[...] = jax.nn.sigmoid(logits)


def model_lstm_forward(inputs, seq_len, params):
    """inputs: (B, T, H) float32 batch_first; seq_len: (B,) int with max(seq_len) == T."""
    B, T, H = inputs.shape
    x = inputs.astype(jnp.float32)
    seq_len = seq_len.astype(jnp.int32)

    # validity mask (B, T): 1.0 where t < seq_len[b]; lane-replicated copy for the (B, T*H) slab
    mask = (jnp.arange(T, dtype=jnp.int32)[None, :] < seq_len[:, None]).astype(jnp.float32)
    mask_rep = jnp.repeat(mask, H, axis=1)                                   # (B, T*H)

    # sigmoid(x) == 0.5*tanh(x/2) + 0.5: pre-scale the i/f/o gate columns (and bias) by 0.5 so the
    # kernel needs only ONE tanh over the whole (B, 4H) gates vreg per step.
    gate_scale = jnp.concatenate([jnp.full((H,), 0.5), jnp.full((H,), 0.5),
                                  jnp.ones((H,)), jnp.full((H,), 0.5)]).astype(jnp.float32)
    wih_t = (params["w_ih"].T * gate_scale[None, :]).astype(jnp.float32)     # (H, 4H)
    whh_t = (params["w_hh"].T * gate_scale[None, :]).astype(jnp.float32)     # (H, 4H)
    bias = ((params["b_ih"] + params["b_hh"]) * gate_scale).reshape(1, 4 * H).astype(jnp.float32)
    wc = params["w_cls"].reshape(1, H).astype(jnp.float32)                   # (1, H)
    bc = params["b_cls"].reshape(1, 1).astype(jnp.float32)                   # (1, 1)

    x2d = x.reshape(B * T, H)   # free metadata reshape (rows are batch-major, time-minor)

    vmem = pl.BlockSpec(memory_space=pltpu.MemorySpace.VMEM)   # whole arrays resident in VMEM

    x_out2d, y2d = pl.pallas_call(
        lstm_kernel,
        out_shape=(jax.ShapeDtypeStruct((B, T * H), jnp.float32),
                   jax.ShapeDtypeStruct((B, T), jnp.float32)),
        in_specs=[vmem] * 8,
        out_specs=(vmem, vmem),
    )(x2d, mask, mask_rep, wih_t, whh_t, bias, wc, bc)

    # free metadata reshapes on the XLA side (keep kernel outputs lane-dense)
    return x_out2d.reshape(B, T, H), y2d.reshape(B, T, 1)


def make_params(key, n_feature):
    """Deterministic init mimicking PyTorch defaults: U(-1/sqrt(H), 1/sqrt(H))."""
    H = n_feature
    bound = 1.0 / math.sqrt(H)
    ks = jax.random.split(key, 6)
    u = lambda k, shape: jax.random.uniform(k, shape, jnp.float32, -bound, bound)
    return {
        "w_ih": u(ks[0], (4 * H, H)),
        "w_hh": u(ks[1], (4 * H, H)),
        "b_ih": u(ks[2], (4 * H,)),
        "b_hh": u(ks[3], (4 * H,)),
        "w_cls": u(ks[4], (1, H)),
        "b_cls": u(ks[5], (1,)),
    }


def reference_forward(inputs, seq_len, params):
    """Pure-JAX reference (lax.scan) matching pack/pad + LSTM + classifier semantics."""
    B, T, H = inputs.shape
    wih_t, whh_t = params["w_ih"].T, params["w_hh"].T
    bias = params["b_ih"] + params["b_hh"]

    def step(carry, xt_t):
        h, c, t = carry
        gates = xt_t @ wih_t + h @ whh_t + bias
        i = jax.nn.sigmoid(gates[:, 0 * H:1 * H])
        f = jax.nn.sigmoid(gates[:, 1 * H:2 * H])
        g = jnp.tanh(gates[:, 2 * H:3 * H])
        o = jax.nn.sigmoid(gates[:, 3 * H:4 * H])
        c = f * c + i * g
        h = o * jnp.tanh(c)
        valid = (t < seq_len).astype(h.dtype)[:, None]
        return (h, c, t + 1), h * valid

    x_tm = jnp.transpose(inputs, (1, 0, 2))
    (_, _, _), hs = lax.scan(step, (jnp.zeros((B, H)), jnp.zeros((B, H)), 0), x_tm)
    x_out = jnp.transpose(hs, (1, 0, 2))
    y_out = jax.nn.sigmoid(x_out @ params["w_cls"].T + params["b_cls"])
    return x_out, y_out


if __name__ == "__main__":
    B, T, H = 2, 8, 32            # n_feature = 32
    key = jax.random.PRNGKey(0)
    k_in, k_par = jax.random.split(key)

    inputs = jax.random.normal(k_in, (B, T, H), jnp.float32)
    seq_len = jnp.array([8, 5], dtype=jnp.int32)   # max(seq_len) == T
    params = make_params(k_par, H)

    x_out, y_out = model_lstm_forward(inputs, seq_len, params)
    jax.block_until_ready((x_out, y_out))

    x_ref, y_ref = reference_forward(inputs, seq_len, params)
    np.testing.assert_allclose(np.asarray(x_out), np.asarray(x_ref), atol=2e-5, rtol=2e-5)
    np.testing.assert_allclose(np.asarray(y_out), np.asarray(y_ref), atol=2e-5, rtol=2e-5)

    assert x_out.shape == (B, T, H) and y_out.shape == (B, T, 1)
    print("KERNEL_OK")
</pallas_src>

<mosaic_0001>
module attributes {stable_mosaic.version = 11 : i64} {
  func.func @lstm_kernel(%arg0: memref<16x32xf32, #tpu.memory_space<vmem>>, %arg1: memref<2x8xf32, #tpu.memory_space<vmem>>, %arg2: memref<2x256xf32, #tpu.memory_space<vmem>>, %arg3: memref<32x128xf32, #tpu.memory_space<vmem>>, %arg4: memref<32x128xf32, #tpu.memory_space<vmem>>, %arg5: memref<1x128xf32, #tpu.memory_space<vmem>>, %arg6: memref<1x32xf32, #tpu.memory_space<vmem>>, %arg7: memref<1x1xf32, #tpu.memory_space<vmem>>, %arg8: memref<2x256xf32, #tpu.memory_space<vmem>>, %arg9: memref<2x8xf32, #tpu.memory_space<vmem>>) attributes {dimension_semantics = [], scalar_prefetch = 0 : i64, scratch_operands = 0 : i64, tpu.core_type = #tpu.core_type<tc>} {
    %c0 = arith.constant 0 : index
    %c0_0 = arith.constant 0 : index
    %0 = vector.load %arg4[%c0, %c0_0] : memref<32x128xf32, #tpu.memory_space<vmem>>, vector<32x128xf32>
    %c0_1 = arith.constant 0 : index
    %c0_2 = arith.constant 0 : index
    %1 = vector.load %arg6[%c0_1, %c0_2] : memref<1x32xf32, #tpu.memory_space<vmem>>, vector<1x32xf32>
    %c0_3 = arith.constant 0 : index
    %c0_4 = arith.constant 0 : index
    %2 = vector.load %arg0[%c0_3, %c0_4] : memref<16x32xf32, #tpu.memory_space<vmem>>, vector<16x32xf32>
    %c0_5 = arith.constant 0 : index
    %c0_6 = arith.constant 0 : index
    %3 = vector.load %arg3[%c0_5, %c0_6] : memref<32x128xf32, #tpu.memory_space<vmem>>, vector<32x128xf32>
    %cst = arith.constant dense<0.000000e+00> : vector<16x128xf32>
    %4 = tpu.matmul %2, %3, %cst {dimension_numbers = #tpu.dot_dimension_numbers<[1], [0], [0], [1], [0, 0, 1, 1], [], []>} : vector<16x32xf32>, vector<32x128xf32>, vector<16x128xf32> -> vector<16x128xf32>
    %c0_7 = arith.constant 0 : index
    %c0_8 = arith.constant 0 : index
    %5 = vector.load %arg5[%c0_7, %c0_8] : memref<1x128xf32, #tpu.memory_space<vmem>>, vector<1x128xf32>
    %6 = vector.broadcast %5 : vector<1x128xf32> to vector<16x128xf32>
    %7 = arith.addf %4, %6 : vector<16x128xf32>
    %8 = vector.shape_cast %7 : vector<16x128xf32> to vector<2x8x128xf32>
    %cst_9 = arith.constant 0.000000e+00 : f32
    %9 = vector.broadcast %cst_9 : f32 to vector<2x32xf32>
    %cst_10 = arith.constant 0.000000e+00 : f32
    %10 = vector.broadcast %cst_10 : f32 to vector<2x32xf32>
    %11 = vector.extract_strided_slice %8 {offsets = [0, 0, 0], sizes = [2, 1, 128], strides = [1, 1, 1]} : vector<2x8x128xf32> to vector<2x1x128xf32>
    %12 = vector.shape_cast %11 : vector<2x1x128xf32> to vector<2x128xf32>
    %cst_11 = arith.constant dense<0.000000e+00> : vector<2x128xf32>
    %13 = tpu.matmul %9, %0, %cst_11 {dimension_numbers = #tpu.dot_dimension_numbers<[1], [0], [0], [1], [0, 0, 1, 1], [], []>} : vector<2x32xf32>, vector<32x128xf32>, vector<2x128xf32> -> vector<2x128xf32>
    %14 = arith.addf %12, %13 : vector<2x128xf32>
    %15 = math.tanh %14 : vector<2x128xf32>
    %16 = vector.extract_strided_slice %15 {offsets = [0, 0], sizes = [2, 32], strides = [1, 1]} : vector<2x128xf32> to vector<2x32xf32>
    %cst_12 = arith.constant 5.000000e-01 : f32
    %17 = vector.broadcast %cst_12 : f32 to vector<2x32xf32>
    %18 = arith.mulf %17, %16 : vector<2x32xf32>
    %cst_13 = arith.constant 5.000000e-01 : f32
    %19 = vector.broadcast %cst_13 : f32 to vector<2x32xf32>
    %20 = arith.addf %18, %19 : vector<2x32xf32>
    %21 = vector.extract_strided_slice %15 {offsets = [0, 32], sizes = [2, 32], strides = [1, 1]} : vector<2x128xf32> to vector<2x32xf32>
    %cst_14 = arith.constant 5.000000e-01 : f32
    %22 = vector.broadcast %cst_14 : f32 to vector<2x32xf32>
    %23 = arith.mulf %22, %21 : vector<2x32xf32>
    %cst_15 = arith.constant 5.000000e-01 : f32
    %24 = vector.broadcast %cst_15 : f32 to vector<2x32xf32>
    %25 = arith.addf %23, %24 : vector<2x32xf32>
    %26 = vector.extract_strided_slice %15 {offsets = [0, 64], sizes = [2, 32], strides = [1, 1]} : vector<2x128xf32> to vector<2x32xf32>
    %27 = vector.extract_strided_slice %15 {offsets = [0, 96], sizes = [2, 32], strides = [1, 1]} : vector<2x128xf32> to vector<2x32xf32>
    %cst_16 = arith.constant 5.000000e-01 : f32
    %28 = vector.broadcast %cst_16 : f32 to vector<2x32xf32>
    %29 = arith.mulf %28, %27 : vector<2x32xf32>
    %cst_17 = arith.constant 5.000000e-01 : f32
    %30 = vector.broadcast %cst_17 : f32 to vector<2x32xf32>
    %31 = arith.addf %29, %30 : vector<2x32xf32>
    %32 = arith.mulf %25, %10 : vector<2x32xf32>
    %33 = arith.mulf %20, %26 : vector<2x32xf32>
    %34 = arith.addf %32, %33 : vector<2x32xf32>
    %35 = math.tanh %34 : vector<2x32xf32>
    %36 = arith.mulf %31, %35 : vector<2x32xf32>
    %37 = vector.extract_strided_slice %8 {offsets = [0, 1, 0], sizes = [2, 1, 128], strides = [1, 1, 1]} : vector<2x8x128xf32> to vector<2x1x128xf32>
    %38 = vector.shape_cast %37 : vector<2x1x128xf32> to vector<2x128xf32>
    %cst_18 = arith.constant dense<0.000000e+00> : vector<2x128xf32>
    %39 = tpu.matmul %36, %0, %cst_18 {dimension_numbers = #tpu.dot_dimension_numbers<[1], [0], [0], [1], [0, 0, 1, 1], [], []>} : vector<2x32xf32>, vector<32x128xf32>, vector<2x128xf32> -> vector<2x128xf32>
    %40 = arith.addf %38, %39 : vector<2x128xf32>
    %41 = math.tanh %40 : vector<2x128xf32>
    %42 = vector.extract_strided_slice %41 {offsets = [0, 0], sizes = [2, 32], strides = [1, 1]} : vector<2x128xf32> to vector<2x32xf32>
    %cst_19 = arith.constant 5.000000e-01 : f32
    %43 = vector.broadcast %cst_19 : f32 to vector<2x32xf32>
    %44 = arith.mulf %43, %42 : vector<2x32xf32>
    %cst_20 = arith.constant 5.000000e-01 : f32
    %45 = vector.broadcast %cst_20 : f32 to vector<2x32xf32>
    %46 = arith.addf %44, %45 : vector<2x32xf32>
    %47 = vector.extract_strided_slice %41 {offsets = [0, 32], sizes = [2, 32], strides = [1, 1]} : vector<2x128xf32> to vector<2x32xf32>
    %cst_21 = arith.constant 5.000000e-01 : f32
    %48 = vector.broadcast %cst_21 : f32 to vector<2x32xf32>
    %49 = arith.mulf %48, %47 : vector<2x32xf32>
    %cst_22 = arith.constant 5.000000e-01 : f32
    %50 = vector.broadcast %cst_22 : f32 to vector<2x32xf32>
    %51 = arith.addf %49, %50 : vector<2x32xf32>
    %52 = vector.extract_strided_slice %41 {offsets = [0, 64], sizes = [2, 32], strides = [1, 1]} : vector<2x128xf32> to vector<2x32xf32>
    %53 = vector.extract_strided_slice %41 {offsets = [0, 96], sizes = [2, 32], strides = [1, 1]} : vector<2x128xf32> to vector<2x32xf32>
    %cst_23 = arith.constant 5.000000e-01 : f32
    %54 = vector.broadcast %cst_23 : f32 to vector<2x32xf32>
    %55 = arith.mulf %54, %53 : vector<2x32xf32>
    %cst_24 = arith.constant 5.000000e-01 : f32
    %56 = vector.broadcast %cst_24 : f32 to vector<2x32xf32>
    %57 = arith.addf %55, %56 : vector<2x32xf32>
    %58 = arith.mulf %51, %34 : vector<2x32xf32>
    %59 = arith.mulf %46, %52 : vector<2x32xf32>
    %60 = arith.addf %58, %59 : vector<2x32xf32>
    %61 = math.tanh %60 : vector<2x32xf32>
    %62 = arith.mulf %57, %61 : vector<2x32xf32>
    %63 = vector.extract_strided_slice %8 {offsets = [0, 2, 0], sizes = [2, 1, 128], strides = [1, 1, 1]} : vector<2x8x128xf32> to vector<2x1x128xf32>
    %64 = vector.shape_cast %63 : vector<2x1x128xf32> to vector<2x128xf32>
    %cst_25 = arith.constant dense<0.000000e+00> : vector<2x128xf32>
    %65 = tpu.matmul %62, %0, %cst_25 {dimension_numbers = #tpu.dot_dimension_numbers<[1], [0], [0], [1], [0, 0, 1, 1], [], []>} : vector<2x32xf32>, vector<32x128xf32>, vector<2x128xf32> -> vector<2x128xf32>
    %66 = arith.addf %64, %65 : vector<2x128xf32>
    %67 = math.tanh %66 : vector<2x128xf32>
    %68 = vector.extract_strided_slice %67 {offsets = [0, 0], sizes = [2, 32], strides = [1, 1]} : vector<2x128xf32> to vector<2x32xf32>
    %cst_26 = arith.constant 5.000000e-01 : f32
    %69 = vector.broadcast %cst_26 : f32 to vector<2x32xf32>
    %70 = arith.mulf %69, %68 : vector<2x32xf32>
    %cst_27 = arith.constant 5.000000e-01 : f32
    %71 = vector.broadcast %cst_27 : f32 to vector<2x32xf32>
    %72 = arith.addf %70, %71 : vector<2x32xf32>
    %73 = vector.extract_strided_slice %67 {offsets = [0, 32], sizes = [2, 32], strides = [1, 1]} : vector<2x128xf32> to vector<2x32xf32>
    %cst_28 = arith.constant 5.000000e-01 : f32
    %74 = vector.broadcast %cst_28 : f32 to vector<2x32xf32>
    %75 = arith.mulf %74, %73 : vector<2x32xf32>
    %cst_29 = arith.constant 5.000000e-01 : f32
    %76 = vector.broadcast %cst_29 : f32 to vector<2x32xf32>
    %77 = arith.addf %75, %76 : vector<2x32xf32>
    %78 = vector.extract_strided_slice %67 {offsets = [0, 64], sizes = [2, 32], strides = [1, 1]} : vector<2x128xf32> to vector<2x32xf32>
    %79 = vector.extract_strided_slice %67 {offsets = [0, 96], sizes = [2, 32], strides = [1, 1]} : vector<2x128xf32> to vector<2x32xf32>
    %cst_30 = arith.constant 5.000000e-01 : f32
    %80 = vector.broadcast %cst_30 : f32 to vector<2x32xf32>
    %81 = arith.mulf %80, %79 : vector<2x32xf32>
    %cst_31 = arith.constant 5.000000e-01 : f32
    %82 = vector.broadcast %cst_31 : f32 to vector<2x32xf32>
    %83 = arith.addf %81, %82 : vector<2x32xf32>
    %84 = arith.mulf %77, %60 : vector<2x32xf32>
    %85 = arith.mulf %72, %78 : vector<2x32xf32>
    %86 = arith.addf %84, %85 : vector<2x32xf32>
    %87 = math.tanh %86 : vector<2x32xf32>
    %88 = arith.mulf %83, %87 : vector<2x32xf32>
    %89 = vector.extract_strided_slice %8 {offsets = [0, 3, 0], sizes = [2, 1, 128], strides = [1, 1, 1]} : vector<2x8x128xf32> to vector<2x1x128xf32>
    %90 = vector.shape_cast %89 : vector<2x1x128xf32> to vector<2x128xf32>
    %cst_32 = arith.constant dense<0.000000e+00> : vector<2x128xf32>
    %91 = tpu.matmul %88, %0, %cst_32 {dimension_numbers = #tpu.dot_dimension_numbers<[1], [0], [0], [1], [0, 0, 1, 1], [], []>} : vector<2x32xf32>, vector<32x128xf32>, vector<2x128xf32> -> vector<2x128xf32>
    %92 = arith.addf %90, %91 : vector<2x128xf32>
    %93 = math.tanh %92 : vector<2x128xf32>
    %94 = vector.extract_strided_slice %93 {offsets = [0, 0], sizes = [2, 32], strides = [1, 1]} : vector<2x128xf32> to vector<2x32xf32>
    %cst_33 = arith.constant 5.000000e-01 : f32
    %95 = vector.broadcast %cst_33 : f32 to vector<2x32xf32>
    %96 = arith.mulf %95, %94 : vector<2x32xf32>
    %cst_34 = arith.constant 5.000000e-01 : f32
    %97 = vector.broadcast %cst_34 : f32 to vector<2x32xf32>
    %98 = arith.addf %96, %97 : vector<2x32xf32>
    %99 = vector.extract_strided_slice %93 {offsets = [0, 32], sizes = [2, 32], strides = [1, 1]} : vector<2x128xf32> to vector<2x32xf32>
    %cst_35 = arith.constant 5.000000e-01 : f32
    %100 = vector.broadcast %cst_35 : f32 to vector<2x32xf32>
    %101 = arith.mulf %100, %99 : vector<2x32xf32>
    %cst_36 = arith.constant 5.000000e-01 : f32
    %102 = vector.broadcast %cst_36 : f32 to vector<2x32xf32>
    %103 = arith.addf %101, %102 : vector<2x32xf32>
    %104 = vector.extract_strided_slice %93 {offsets = [0, 64], sizes = [2, 32], strides = [1, 1]} : vector<2x128xf32> to vector<2x32xf32>
    %105 = vector.extract_strided_slice %93 {offsets = [0, 96], sizes = [2, 32], strides = [1, 1]} : vector<2x128xf32> to vector<2x32xf32>
    %cst_37 = arith.constant 5.000000e-01 : f32
    %106 = vector.broadcast %cst_37 : f32 to vector<2x32xf32>
    %107 = arith.mulf %106, %105 : vector<2x32xf32>
    %cst_38 = arith.constant 5.000000e-01 : f32
    %108 = vector.broadcast %cst_38 : f32 to vector<2x32xf32>
    %109 = arith.addf %107, %108 : vector<2x32xf32>
    %110 = arith.mulf %103, %86 : vector<2x32xf32>
    %111 = arith.mulf %98, %104 : vector<2x32xf32>
    %112 = arith.addf %110, %111 : vector<2x32xf32>
    %113 = math.tanh %112 : vector<2x32xf32>
    %114 = arith.mulf %109, %113 : vector<2x32xf32>
    %115 = vector.extract_strided_slice %8 {offsets = [0, 4, 0], sizes = [2, 1, 128], strides = [1, 1, 1]} : vector<2x8x128xf32> to vector<2x1x128xf32>
    %116 = vector.shape_cast %115 : vector<2x1x128xf32> to vector<2x128xf32>
    %cst_39 = arith.constant dense<0.000000e+00> : vector<2x128xf32>
    %117 = tpu.matmul %114, %0, %cst_39 {dimension_numbers = #tpu.dot_dimension_numbers<[1], [0], [0], [1], [0, 0, 1, 1], [], []>} : vector<2x32xf32>, vector<32x128xf32>, vector<2x128xf32> -> vector<2x128xf32>
    %118 = arith.addf %116, %117 : vector<2x128xf32>
    %119 = math.tanh %118 : vector<2x128xf32>
    %120 = vector.extract_strided_slice %119 {offsets = [0, 0], sizes = [2, 32], strides = [1, 1]} : vector<2x128xf32> to vector<2x32xf32>
    %cst_40 = arith.constant 5.000000e-01 : f32
    %121 = vector.broadcast %cst_40 : f32 to vector<2x32xf32>
    %122 = arith.mulf %121, %120 : vector<2x32xf32>
    %cst_41 = arith.constant 5.000000e-01 : f32
    %123 = vector.broadcast %cst_41 : f32 to vector<2x32xf32>
    %124 = arith.addf %122, %123 : vector<2x32xf32>
    %125 = vector.extract_strided_slice %119 {offsets = [0, 32], sizes = [2, 32], strides = [1, 1]} : vector<2x128xf32> to vector<2x32xf32>
    %cst_42 = arith.constant 5.000000e-01 : f32
    %126 = vector.broadcast %cst_42 : f32 to vector<2x32xf32>
    %127 = arith.mulf %126, %125 : vector<2x32xf32>
    %cst_43 = arith.constant 5.000000e-01 : f32
    %128 = vector.broadcast %cst_43 : f32 to vector<2x32xf32>
    %129 = arith.addf %127, %128 : vector<2x32xf32>
    %130 = vector.extract_strided_slice %119 {offsets = [0, 64], sizes = [2, 32], strides = [1, 1]} : vector<2x128xf32> to vector<2x32xf32>
    %131 = vector.extract_strided_slice %119 {offsets = [0, 96], sizes = [2, 32], strides = [1, 1]} : vector<2x128xf32> to vector<2x32xf32>
    %cst_44 = arith.constant 5.000000e-01 : f32
    %132 = vector.broadcast %cst_44 : f32 to vector<2x32xf32>
    %133 = arith.mulf %132, %131 : vector<2x32xf32>
    %cst_45 = arith.constant 5.000000e-01 : f32
    %134 = vector.broadcast %cst_45 : f32 to vector<2x32xf32>
    %135 = arith.addf %133, %134 : vector<2x32xf32>
    %136 = arith.mulf %129, %112 : vector<2x32xf32>
    %137 = arith.mulf %124, %130 : vector<2x32xf32>
    %138 = arith.addf %136, %137 : vector<2x32xf32>
    %139 = math.tanh %138 : vector<2x32xf32>
    %140 = arith.mulf %135, %139 : vector<2x32xf32>
    %141 = vector.extract_strided_slice %8 {offsets = [0, 5, 0], sizes = [2, 1, 128], strides = [1, 1, 1]} : vector<2x8x128xf32> to vector<2x1x128xf32>
    %142 = vector.shape_cast %141 : vector<2x1x128xf32> to vector<2x128xf32>
    %cst_46 = arith.constant dense<0.000000e+00> : vector<2x128xf32>
    %143 = tpu.matmul %140, %0, %cst_46 {dimension_numbers = #tpu.dot_dimension_numbers<[1], [0], [0], [1], [0, 0, 1, 1], [], []>} : vector<2x32xf32>, vector<32x128xf32>, vector<2x128xf32> -> vector<2x128xf32>
    %144 = arith.addf %142, %143 : vector<2x128xf32>
    %145 = math.tanh %144 : vector<2x128xf32>
    %146 = vector.extract_strided_slice %145 {offsets = [0, 0], sizes = [2, 32], strides = [1, 1]} : vector<2x128xf32> to vector<2x32xf32>
    %cst_47 = arith.constant 5.000000e-01 : f32
    %147 = vector.broadcast %cst_47 : f32 to vector<2x32xf32>
    %148 = arith.mulf %147, %146 : vector<2x32xf32>
    %cst_48 = arith.constant 5.000000e-01 : f32
    %149 = vector.broadcast %cst_48 : f32 to vector<2x32xf32>
    %150 = arith.addf %148, %149 : vector<2x32xf32>
    %151 = vector.extract_strided_slice %145 {offsets = [0, 32], sizes = [2, 32], strides = [1, 1]} : vector<2x128xf32> to vector<2x32xf32>
    %cst_49 = arith.constant 5.000000e-01 : f32
    %152 = vector.broadcast %cst_49 : f32 to vector<2x32xf32>
    %153 = arith.mulf %152, %151 : vector<2x32xf32>
    %cst_50 = arith.constant 5.000000e-01 : f32
    %154 = vector.broadcast %cst_50 : f32 to vector<2x32xf32>
    %155 = arith.addf %153, %154 : vector<2x32xf32>
    %156 = vector.extract_strided_slice %145 {offsets = [0, 64], sizes = [2, 32], strides = [1, 1]} : vector<2x128xf32> to vector<2x32xf32>
    %157 = vector.extract_strided_slice %145 {offsets = [0, 96], sizes = [2, 32], strides = [1, 1]} : vector<2x128xf32> to vector<2x32xf32>
    %cst_51 = arith.constant 5.000000e-01 : f32
    %158 = vector.broadcast %cst_51 : f32 to vector<2x32xf32>
    %159 = arith.mulf %158, %157 : vector<2x32xf32>
    %cst_52 = arith.constant 5.000000e-01 : f32
    %160 = vector.broadcast %cst_52 : f32 to vector<2x32xf32>
    %161 = arith.addf %159, %160 : vector<2x32xf32>
    %162 = arith.mulf %155, %138 : vector<2x32xf32>
    %163 = arith.mulf %150, %156 : vector<2x32xf32>
    %164 = arith.addf %162, %163 : vector<2x32xf32>
    %165 = math.tanh %164 : vector<2x32xf32>
    %166 = arith.mulf %161, %165 : vector<2x32xf32>
    %167 = vector.extract_strided_slice %8 {offsets = [0, 6, 0], sizes = [2, 1, 128], strides = [1, 1, 1]} : vector<2x8x128xf32> to vector<2x1x128xf32>
    %168 = vector.shape_cast %167 : vector<2x1x128xf32> to vector<2x128xf32>
    %cst_53 = arith.constant dense<0.000000e+00> : vector<2x128xf32>
    %169 = tpu.matmul %166, %0, %cst_53 {dimension_numbers = #tpu.dot_dimension_numbers<[1], [0], [0], [1], [0, 0, 1, 1], [], []>} : vector<2x32xf32>, vector<32x128xf32>, vector<2x128xf32> -> vector<2x128xf32>
    %170 = arith.addf %168, %169 : vector<2x128xf32>
    %171 = math.tanh %170 : vector<2x128xf32>
    %172 = vector.extract_strided_slice %171 {offsets = [0, 0], sizes = [2, 32], strides = [1, 1]} : vector<2x128xf32> to vector<2x32xf32>
    %cst_54 = arith.constant 5.000000e-01 : f32
    %173 = vector.broadcast %cst_54 : f32 to vector<2x32xf32>
    %174 = arith.mulf %173, %172 : vector<2x32xf32>
    %cst_55 = arith.constant 5.000000e-01 : f32
    %175 = vector.broadcast %cst_55 : f32 to vector<2x32xf32>
    %176 = arith.addf %174, %175 : vector<2x32xf32>
    %177 = vector.extract_strided_slice %171 {offsets = [0, 32], sizes = [2, 32], strides = [1, 1]} : vector<2x128xf32> to vector<2x32xf32>
    %cst_56 = arith.constant 5.000000e-01 : f32
    %178 = vector.broadcast %cst_56 : f32 to vector<2x32xf32>
    %179 = arith.mulf %178, %177 : vector<2x32xf32>
    %cst_57 = arith.constant 5.000000e-01 : f32
    %180 = vector.broadcast %cst_57 : f32 to vector<2x32xf32>
    %181 = arith.addf %179, %180 : vector<2x32xf32>
    %182 = vector.extract_strided_slice %171 {offsets = [0, 64], sizes = [2, 32], strides = [1, 1]} : vector<2x128xf32> to vector<2x32xf32>
    %183 = vector.extract_strided_slice %171 {offsets = [0, 96], sizes = [2, 32], strides = [1, 1]} : vector<2x128xf32> to vector<2x32xf32>
    %cst_58 = arith.constant 5.000000e-01 : f32
    %184 = vector.broadcast %cst_58 : f32 to vector<2x32xf32>
    %185 = arith.mulf %184, %183 : vector<2x32xf32>
    %cst_59 = arith.constant 5.000000e-01 : f32
    %186 = vector.broadcast %cst_59 : f32 to vector<2x32xf32>
    %187 = arith.addf %185, %186 : vector<2x32xf32>
    %188 = arith.mulf %181, %164 : vector<2x32xf32>
    %189 = arith.mulf %176, %182 : vector<2x32xf32>
    %190 = arith.addf %188, %189 : vector<2x32xf32>
    %191 = math.tanh %190 : vector<2x32xf32>
    %192 = arith.mulf %187, %191 : vector<2x32xf32>
    %193 = vector.extract_strided_slice %8 {offsets = [0, 7, 0], sizes = [2, 1, 128], strides = [1, 1, 1]} : vector<2x8x128xf32> to vector<2x1x128xf32>
    %194 = vector.shape_cast %193 : vector<2x1x128xf32> to vector<2x128xf32>
    %cst_60 = arith.constant dense<0.000000e+00> : vector<2x128xf32>
    %195 = tpu.matmul %192, %0, %cst_60 {dimension_numbers = #tpu.dot_dimension_numbers<[1], [0], [0], [1], [0, 0, 1, 1], [], []>} : vector<2x32xf32>, vector<32x128xf32>, vector<2x128xf32> -> vector<2x128xf32>
    %196 = arith.addf %194, %195 : vector<2x128xf32>
    %197 = math.tanh %196 : vector<2x128xf32>
    %198 = vector.extract_strided_slice %197 {offsets = [0, 0], sizes = [2, 32], strides = [1, 1]} : vector<2x128xf32> to vector<2x32xf32>
    %cst_61 = arith.constant 5.000000e-01 : f32
    %199 = vector.broadcast %cst_61 : f32 to vector<2x32xf32>
    %200 = arith.mulf %199, %198 : vector<2x32xf32>
    %cst_62 = arith.constant 5.000000e-01 : f32
    %201 = vector.broadcast %cst_62 : f32 to vector<2x32xf32>
    %202 = arith.addf %200, %201 : vector<2x32xf32>
    %203 = vector.extract_strided_slice %197 {offsets = [0, 32], sizes = [2, 32], strides = [1, 1]} : vector<2x128xf32> to vector<2x32xf32>
    %cst_63 = arith.constant 5.000000e-01 : f32
    %204 = vector.broadcast %cst_63 : f32 to vector<2x32xf32>
    %205 = arith.mulf %204, %203 : vector<2x32xf32>
    %cst_64 = arith.constant 5.000000e-01 : f32
    %206 = vector.broadcast %cst_64 : f32 to vector<2x32xf32>
    %207 = arith.addf %205, %206 : vector<2x32xf32>
    %208 = vector.extract_strided_slice %197 {offsets = [0, 64], sizes = [2, 32], strides = [1, 1]} : vector<2x128xf32> to vector<2x32xf32>
    %209 = vector.extract_strided_slice %197 {offsets = [0, 96], sizes = [2, 32], strides = [1, 1]} : vector<2x128xf32> to vector<2x32xf32>
    %cst_65 = arith.constant 5.000000e-01 : f32
    %210 = vector.broadcast %cst_65 : f32 to vector<2x32xf32>
    %211 = arith.mulf %210, %209 : vector<2x32xf32>
    %cst_66 = arith.constant 5.000000e-01 : f32
    %212 = vector.broadcast %cst_66 : f32 to vector<2x32xf32>
    %213 = arith.addf %211, %212 : vector<2x32xf32>
    %214 = arith.mulf %207, %190 : vector<2x32xf32>
    %215 = arith.mulf %202, %208 : vector<2x32xf32>
    %216 = arith.addf %214, %215 : vector<2x32xf32>
    %217 = math.tanh %216 : vector<2x32xf32>
    %218 = arith.mulf %213, %217 : vector<2x32xf32>
    %219 = tpu.concatenate %36, %62, %88, %114, %140, %166, %192, %218 in 1 : vector<2x32xf32>, vector<2x32xf32>, vector<2x32xf32>, vector<2x32xf32>, vector<2x32xf32>, vector<2x32xf32>, vector<2x32xf32>, vector<2x32xf32> -> vector<2x256xf32>
    %c0_67 = arith.constant 0 : index
    %c0_68 = arith.constant 0 : index
    %220 = vector.load %arg2[%c0_67, %c0_68] : memref<2x256xf32, #tpu.memory_space<vmem>>, vector<2x256xf32>
    %221 = arith.mulf %219, %220 : vector<2x256xf32>
    %c0_69 = arith.constant 0 : index
    %c0_70 = arith.constant 0 : index
    %222 = vector.load %arg8[%c0_69, %c0_70] : memref<2x256xf32, #tpu.memory_space<vmem>>, vector<2x256xf32>
    tpu.vector_store %arg8[%c0_69, %c0_70], %221 {strides = array<i32>} : memref<2x256xf32, #tpu.memory_space<vmem>>, vector<2x256xf32>,
    %223 = vector.broadcast %1 : vector<1x32xf32> to vector<2x32xf32>
    %224 = arith.mulf %36, %223 : vector<2x32xf32>
    %cst_71 = arith.constant dense<0.000000e+00> : vector<2xf32>
    %225 = vector.multi_reduction <add>, %224, %cst_71 [1] : vector<2x32xf32> to vector<2xf32>
    %226 = vector.shape_cast %225 : vector<2xf32> to vector<2x1xf32>
    %227 = vector.broadcast %1 : vector<1x32xf32> to vector<2x32xf32>
    %228 = arith.mulf %62, %227 : vector<2x32xf32>
    %cst_72 = arith.constant dense<0.000000e+00> : vector<2xf32>
    %229 = vector.multi_reduction <add>, %228, %cst_72 [1] : vector<2x32xf32> to vector<2xf32>
    %230 = vector.shape_cast %229 : vector<2xf32> to vector<2x1xf32>
    %231 = vector.broadcast %1 : vector<1x32xf32> to vector<2x32xf32>
    %232 = arith.mulf %88, %231 : vector<2x32xf32>
    %cst_73 = arith.constant dense<0.000000e+00> : vector<2xf32>
    %233 = vector.multi_reduction <add>, %232, %cst_73 [1] : vector<2x32xf32> to vector<2xf32>
    %234 = vector.shape_cast %233 : vector<2xf32> to vector<2x1xf32>
    %235 = vector.broadcast %1 : vector<1x32xf32> to vector<2x32xf32>
    %236 = arith.mulf %114, %235 : vector<2x32xf32>
    %cst_74 = arith.constant dense<0.000000e+00> : vector<2xf32>
    %237 = vector.multi_reduction <add>, %236, %cst_74 [1] : vector<2x32xf32> to vector<2xf32>
    %238 = vector.shape_cast %237 : vector<2xf32> to vector<2x1xf32>
    %239 = vector.broadcast %1 : vector<1x32xf32> to vector<2x32xf32>
    %240 = arith.mulf %140, %239 : vector<2x32xf32>
    %cst_75 = arith.constant dense<0.000000e+00> : vector<2xf32>
    %241 = vector.multi_reduction <add>, %240, %cst_75 [1] : vector<2x32xf32> to vector<2xf32>
    %242 = vector.shape_cast %241 : vector<2xf32> to vector<2x1xf32>
    %243 = vector.broadcast %1 : vector<1x32xf32> to vector<2x32xf32>
    %244 = arith.mulf %166, %243 : vector<2x32xf32>
    %cst_76 = arith.constant dense<0.000000e+00> : vector<2xf32>
    %245 = vector.multi_reduction <add>, %244, %cst_76 [1] : vector<2x32xf32> to vector<2xf32>
    %246 = vector.shape_cast %245 : vector<2xf32> to vector<2x1xf32>
    %247 = vector.broadcast %1 : vector<1x32xf32> to vector<2x32xf32>
    %248 = arith.mulf %192, %247 : vector<2x32xf32>
    %cst_77 = arith.constant dense<0.000000e+00> : vector<2xf32>
    %249 = vector.multi_reduction <add>, %248, %cst_77 [1] : vector<2x32xf32> to vector<2xf32>
    %250 = vector.shape_cast %249 : vector<2xf32> to vector<2x1xf32>
    %251 = vector.broadcast %1 : vector<1x32xf32> to vector<2x32xf32>
    %252 = arith.mulf %218, %251 : vector<2x32xf32>
    %cst_78 = arith.constant dense<0.000000e+00> : vector<2xf32>
    %253 = vector.multi_reduction <add>, %252, %cst_78 [1] : vector<2x32xf32> to vector<2xf32>
    %254 = vector.shape_cast %253 : vector<2xf32> to vector<2x1xf32>
    %255 = tpu.concatenate %226, %230, %234, %238, %242, %246, %250, %254 in 1 : vector<2x1xf32>, vector<2x1xf32>, vector<2x1xf32>, vector<2x1xf32>, vector<2x1xf32>, vector<2x1xf32>, vector<2x1xf32>, vector<2x1xf32> -> vector<2x8xf32>
    %c0_79 = arith.constant 0 : index
    %c0_80 = arith.constant 0 : index
    %256 = vector.load %arg1[%c0_79, %c0_80] : memref<2x8xf32, #tpu.memory_space<vmem>>, vector<2x8xf32>
    %257 = arith.mulf %255, %256 : vector<2x8xf32>
    %c0_81 = arith.constant 0 : index
    %c0_82 = arith.constant 0 : index
    %258 = vector.load %arg7[%c0_81, %c0_82] : memref<1x1xf32, #tpu.memory_space<vmem>>, vector<1x1xf32>
    %259 = vector.broadcast %258 : vector<1x1xf32> to vector<2x8xf32>
    %260 = arith.addf %257, %259 : vector<2x8xf32>
    %261 = arith.negf %260 : vector<2x8xf32>
    %262 = math.exp %261 : vector<2x8xf32>
    %cst_83 = arith.constant 1.000000e+00 : f32
    %263 = vector.broadcast %cst_83 : f32 to vector<2x8xf32>
    %264 = arith.addf %263, %262 : vector<2x8xf32>
    %265 = arith.divf %263, %264 : vector<2x8xf32>
    %c0_84 = arith.constant 0 : index
    %c0_85 = arith.constant 0 : index
    %266 = vector.load %arg9[%c0_84, %c0_85] : memref<2x8xf32, #tpu.memory_space<vmem>>, vector<2x8xf32>
    tpu.vector_store %arg9[%c0_84, %c0_85], %265 {strides = array<i32>} : memref<2x8xf32, #tpu.memory_space<vmem>>, vector<2x8xf32>,
    return
  }
}

</mosaic_0001>

<llo_original>
// kernel: tpu_custom_call.1
$region0: #{tpu_custom_call.1}
  #allocation0 [shape = 'u32[]', space=smem, size = 0x4, offset = 0x4, fixed_abs, tag = 'smem constant byte address 0x4 - core index']
  #allocation1 [shape = 'u32[144,128]{1,0:T(1,128)}', space=vmem, size = 0x12000, scoped, tag = 'internal scratch']
  #allocation2 [shape = 'f32[1,1]{1,0:T(1,128)S(1)}', space=vmem, size = 0x200, scoped, tag = 'scoped memory for tpu_custom_call.1']
  %s0 = inlined_call_operand.hbm [shape: f32[16,32], index: 0, kind: input, shape index: {}]
  %s1 = inlined_call_operand.hbm [shape: f32[2,8], index: 1, kind: input, shape index: {}]
  %s2 = inlined_call_operand.vmem [shape: f32[2,256], index: 2, kind: input, shape index: {}]
  %s3 = inlined_call_operand.hbm [shape: f32[32,128], index: 3, kind: input, shape index: {}]
  %s4 = inlined_call_operand.hbm [shape: f32[32,128], index: 4, kind: input, shape index: {}]
  %s5 = inlined_call_operand.vmem [shape: f32[1,128], index: 5, kind: input, shape index: {}]
  %s6 = inlined_call_operand.vmem [shape: f32[1,32], index: 6, kind: input, shape index: {}]
  %s7 = inlined_call_operand.<no memory space> [shape: f32[1,1], index: 7, kind: input, shape index: {}]
  %s8 = inlined_call_operand.hbm [shape: f32[2,256], index: 8, kind: output, shape index: {0}]
  %s9 = inlined_call_operand.hbm [shape: f32[2,8], index: 9, kind: output, shape index: {1}]
  %10 = xla_tuple %s8, %s9
  %s11 = sld [smem:[#allocation0]]
  $region66: #{tpu_custom_call.1} parent=0
    _
  %s13 = ssub.s32 1, %s11
  %s14 = scalar_select 0, %s13, %s11
  %v15 = vstv %s7
  %16 = vst [vmem:[#allocation2] sm:$0x1] %v15
  $region1: #{tpu_custom_call.1} parent=0
    #allocation3 [shape = 'u8[8192]{0}', space=vmem, size = 0x2000, scoped, tag = 'input window, operand 0, single buffered']
    #allocation4 [shape = 's32[1]{0}', space=sflag, size = 0x4, scoped, tag = 'scoped memory for tpu_custom_call.1']
    #allocation5 [shape = 's32[1]{0}', space=sflag, size = 0x4, scoped, tag = 'scoped memory for tpu_custom_call.1']
    #allocation6 [shape = 'u8[1024]{0}', space=vmem, size = 0x400, scoped, tag = 'input window, operand 1, single buffered']
    #allocation7 [shape = 's32[1]{0}', space=sflag, size = 0x4, scoped, tag = 'scoped memory for tpu_custom_call.1']
    #allocation8 [shape = 'u8[16384]{0}', space=vmem, size = 0x4000, scoped, tag = 'input window, operand 3, single buffered']
    #allocation9 [shape = 'u8[16384]{0}', space=vmem, size = 0x4000, scoped, tag = 'input window, operand 4, single buffered']
    #allocation10 [shape = 's32[1]{0}', space=sflag, size = 0x4, scoped, tag = 'scoped memory for tpu_custom_call.1']
    #allocation11 [shape = 'u8[2048]{0}', space=vmem, size = 0x800, scoped, tag = 'output window, operand 0, single buffered']
    #allocation12 [shape = 'u8[1024]{0}', space=vmem, size = 0x400, scoped, tag = 'output window, operand 1, single buffered']
    #allocation13 [shape = 's32[1]{0}', space=sflag, size = 0x4, scoped, tag = 'scoped memory for tpu_custom_call.1']
    %17 = vsyncpa [#allocation4], 0
    %18 = vsyncpa [#allocation7], 0
    %19 = vsyncpa [#allocation10], 0
    %20 = vsyncpa [#allocation5], 0
    %21 = vsyncpa [#allocation13], 0
    // Predicated region
    $region2: #{tpu_custom_call.1} parent=1 // pred_check
      _
    $region3: #{tpu_custom_call.1} parent=1 // pred_check_branch
      %23 = sbr.rel (0) target = $region5
    $region4: #{tpu_custom_call.1} parent=1 // pred_region
      %s25 = ssub.s32 256, 256
      %26 = vsyncadd [#allocation4], %s25
      %s27 = sshll.u32 [#allocation3], 4
      %s28 = int_to_ptr.vmem [resolvable:$true] %s27
      %33 = dma.hbm_to_vmem [thread:$0]  %s0, 256, %s28, [#allocation4], 128, 128, 8
    $region5: #{tpu_custom_call.1} parent=1 // pred_fallthru
      _
    // Predicated region
    $region6: #{tpu_custom_call.1} parent=1 // pred_check
      _
    $region7: #{tpu_custom_call.1} parent=1 // pred_check_branch
      %35 = sbr.rel (0) target = $region9
    $region8: #{tpu_custom_call.1} parent=1 // pred_region
      %s37 = ssub.s32 32, 32
      %38 = vsyncadd [#allocation7], %s37
      %s40 = sshll.u32 [#allocation6], 4
      %s41 = int_to_ptr.vmem [resolvable:$true] %s40
      %43 = dma.hbm_to_vmem [thread:$0]  %s1, 32, %s41, [#allocation7]
    $region9: #{tpu_custom_call.1} parent=1 // pred_fallthru
      _
    // Predicated region
    $region10: #{tpu_custom_call.1} parent=1 // pred_check
      _
    $region11: #{tpu_custom_call.1} parent=1 // pred_check_branch
      %45 = sbr.rel (0) target = $region13
    $region12: #{tpu_custom_call.1} parent=1 // pred_region
      _
    $region13: #{tpu_custom_call.1} parent=1 // pred_fallthru
      _
    // Predicated region
    $region14: #{tpu_custom_call.1} parent=1 // pred_check
      _
    $region15: #{tpu_custom_call.1} parent=1 // pred_check_branch
      %47 = sbr.rel (0) target = $region17
    $region16: #{tpu_custom_call.1} parent=1 // pred_region
      %s49 = ssub.s32 512, 512
      %50 = vsyncadd [#allocation7], %s49
      %s51 = sshll.u32 [#allocation8], 4
      %s52 = int_to_ptr.vmem [resolvable:$true] %s51
      %57 = dma.hbm_to_vmem [thread:$0]  %s3, 512, %s52, [#allocation7], 128, 128, 8
    $region17: #{tpu_custom_call.1} parent=1 // pred_fallthru
      _
    // Predicated region
    $region18: #{tpu_custom_call.1} parent=1 // pred_check
      _
    $region19: #{tpu_custom_call.1} parent=1 // pred_check_branch
      %59 = sbr.rel (0) target = $region21
    $region20: #{tpu_custom_call.1} parent=1 // pred_region
      %s61 = ssub.s32 512, 512
      %62 = vsyncadd [#allocation10], %s61
      %s63 = sshll.u32 [#allocation9], 4
      %s64 = int_to_ptr.vmem [resolvable:$true] %s63
      %69 = dma.hbm_to_vmem [thread:$0]  %s4, 512, %s64, [#allocation10], 128, 128, 8
    $region21: #{tpu_custom_call.1} parent=1 // pred_fallthru
      _
    // Predicated region
    $region22: #{tpu_custom_call.1} parent=1 // pred_check
      _
    $region23: #{tpu_custom_call.1} parent=1 // pred_check_branch
      %71 = sbr.rel (0) target = $region25
    $region24: #{tpu_custom_call.1} parent=1 // pred_region
      _
    $region25: #{tpu_custom_call.1} parent=1 // pred_fallthru
      _
    // Predicated region
    $region26: #{tpu_custom_call.1} parent=1 // pred_check
      _
    $region27: #{tpu_custom_call.1} parent=1 // pred_check_branch
      %73 = sbr.rel (0) target = $region29
    $region28: #{tpu_custom_call.1} parent=1 // pred_region
      _
    $region29: #{tpu_custom_call.1} parent=1 // pred_fallthru
      _
    // Predicated region
    $region30: #{tpu_custom_call.1} parent=1 // pred_check
      _
    $region31: #{tpu_custom_call.1} parent=1 // pred_check_branch
      %75 = sbr.rel (0) target = $region33
    $region32: #{tpu_custom_call.1} parent=1 // pred_region
      _
    $region33: #{tpu_custom_call.1} parent=1 // pred_fallthru
      _
    // Predicated region
    $region34: #{tpu_custom_call.1} parent=1 // pred_check
      _
    $region35: #{tpu_custom_call.1} parent=1 // pred_check_branch
      %77 = sbr.rel (0) target = $region37
    $region36: #{tpu_custom_call.1} parent=1 // pred_region
      %78 = dma.done [#allocation4], 256
    $region37: #{tpu_custom_call.1} parent=1 // pred_fallthru
      _
    // Predicated region
    $region38: #{tpu_custom_call.1} parent=1 // pred_check
      _
    $region39: #{tpu_custom_call.1} parent=1 // pred_check_branch
      %80 = sbr.rel (0) target = $region41
    $region40: #{tpu_custom_call.1} parent=1 // pred_region
      %81 = dma.done [#allocation7], 32
    $region41: #{tpu_custom_call.1} parent=1 // pred_fallthru
      _
    // Predicated region
    $region42: #{tpu_custom_call.1} parent=1 // pred_check
      _
    $region43: #{tpu_custom_call.1} parent=1 // pred_check_branch
      %83 = sbr.rel (0) target = $region45
    $region44: #{tpu_custom_call.1} parent=1 // pred_region
      %84 = dma.done [#allocation7], 512
    $region45: #{tpu_custom_call.1} parent=1 // pred_fallthru
      _
    // Predicated region
    $region46: #{tpu_custom_call.1} parent=1 // pred_check
      _
    $region47: #{tpu_custom_call.1} parent=1 // pred_check_branch
      %86 = sbr.rel (0) target = $region49
    $region48: #{tpu_custom_call.1} parent=1 // pred_region
      %87 = dma.done [#allocation10], 512
    $region49: #{tpu_custom_call.1} parent=1 // pred_fallthru
      _
    %v88 = vld [vmem:[#allocation9] sm:$0xff]
    %v89 = vld [vmem:[#allocation9 + $0x8] sm:$0xff]
    %v90 = vld [vmem:[#allocation9 + $0x10] sm:$0xff]
    %v91 = vld [vmem:[#allocation9 + $0x18] sm:$0xff]
    %v92 = vld [vmem:[%s6] sm:$0x1]
    %v93 = vld [vmem:[#allocation3] sm:$0xff]
    %v94 = vld [vmem:[#allocation3 + $0x8] sm:$0xff]
    %v95 = vld [vmem:[#allocation8] sm:$0xff]
    %v96 = vld [vmem:[#allocation8 + $0x8] sm:$0xff]
    %v97 = vld [vmem:[#allocation8 + $0x10] sm:$0xff]
    %v98 = vld [vmem:[#allocation8 + $0x18] sm:$0xff]
    %v99 = vld [vmem:[%s5] sm:$0x1]
    %v101 = vlaneseq
    %v102 = vshrl.u32 %v101, 7
    %v103 = vsub.s32 0, %v102
    %v104 = vrot.slane %v99, %v103
    %vm106 = vcmask 261120
    %v108 = vsel %vm106, %v93, 0
    %v111 = vsel %vm106, %v94, 0
    %113 = vmatprep.subr.mxu0 0.0
    %114 = vmatpush1.msra.mxu0 0.0
    %115 = vmatprep.subr.mxu0 0.0
    %116 = vmatpush1.msra.mxu0 0.0
    %117 = vmatprep.subr.mxu0 0.0
    %118 = vmatpush1.msra.mxu0 0.0
    %119 = vmatprep.subr.mxu0 0.0
    %120 = vmatpush1.msra.mxu0 0.0
    %121 = vmatprep.subr.mxu0 0.0
    %122 = vmatpush1.msra.mxu0 0.0
    %123 = vmatprep.subr.mxu0 0.0
    %124 = vmatpush1.msra.mxu0 0.0
    %125 = vmatprep.subr.mxu0 0.0
    %126 = vmatpush1.msra.mxu0 0.0
    %127 = vmatprep.subr.mxu0 0.0
    %128 = vmatpush1.msra.mxu0 0.0
    %129 = vmatprep.subr.mxu0 0.0
    %130 = vmatpush1.msra.mxu0 0.0
    %131 = vmatprep.subr.mxu0 0.0
    %132 = vmatpush1.msra.mxu0 0.0
    %133 = vmatprep.subr.mxu0 0.0
    %134 = vmatpush1.msra.mxu0 0.0
    %135 = vmatprep.subr.mxu0 0.0
    %136 = vmatpush1.msra.mxu0 0.0
    %137 = vmatprep.subr.mxu0 0.0
    %138 = vmatpush1.msra.mxu0 %v98
    %139 = vmatprep.subr.mxu0 0.0
    %140 = vmatpush1.msra.mxu0 %v97
    %141 = vmatprep.subr.mxu0 0.0
    %142 = vmatpush1.msra.mxu0 %v96
    %143 = vmatprep.subr.mxu0 0.0
    %144 = vmatpush1.msra.mxu0 %v95
    %145 = vmatprep.subr.mxu0 0.0
    %146 = vmatpush2.msra.mxu0 0.0
    %147 = vmatprep.subr.mxu0 0.0
    %148 = vmatpush2.msra.mxu0 0.0
    %149 = vmatprep.subr.mxu0 0.0
    %150 = vmatpush2.msra.mxu0 0.0
    %151 = vmatprep.subr.mxu0 0.0
    %152 = vmatpush2.msra.mxu0 0.0
    %153 = vmatprep.subr.mxu0 0.0
    %154 = vmatpush2.msra.mxu0 0.0
    %155 = vmatprep.subr.mxu0 0.0
    %156 = vmatpush2.msra.mxu0 0.0
    %157 = vmatprep.subr.mxu0 0.0
    %158 = vmatpush2.msra.mxu0 0.0
    %159 = vmatprep.subr.mxu0 0.0
    %160 = vmatpush2.msra.mxu0 0.0
    %161 = vmatprep.subr.mxu0 0.0
    %162 = vmatpush2.msra.mxu0 0.0
    %163 = vmatprep.subr.mxu0 0.0
    %164 = vmatpush2.msra.mxu0 0.0
    %165 = vmatprep.subr.mxu0 0.0
    %166 = vmatpush2.msra.mxu0 0.0
    %167 = vmatprep.subr.mxu0 0.0
    %168 = vmatpush2.msra.mxu0 0.0
    %169 = vmatprep.subr.mxu0 0.0
    %170 = vmatpush2.msra.mxu0 0.0
    %171 = vmatprep.subr.mxu0 0.0
    %172 = vmatpush2.msra.mxu0 0.0
    %173 = vmatprep.subr.mxu0 0.0
    %174 = vmatpush2.msra.mxu0 0.0
    %175 = vmatprep.subr.mxu0 0.0
    %176 = vmatpush2.msra.mxu0 0.0
    %177 = vmatprep.mubr.f32.mxu0 0.0
    %178 = vmatmul.mubr.f32.gmra.mxu0 %v108
    %v179 = vpop.f32.mrf.mxu0
    %v180 = vadd.f32 %v104, %v179
    %v181 = vpop.f32.mrf.mxu0
    %182 = vmatprep.mubr.f32.mxu0 0.0
    %183 = vmatmul.mubr.f32.gmra.mxu0 %v111
    %v184 = vpop.f32.mrf.mxu0
    %v185 = vadd.f32 %v104, %v184
    %v186 = vpop.f32.mrf.mxu0
    %187 = vdwg.mxu0
    %v189 = vsel %vm106, 0.0, 0
    %191 = vmatprep.subr.mxu0 0.0
    %192 = vmatpush1.msra.mxu0 0.0
    %193 = vmatprep.subr.mxu0 0.0
    %194 = vmatpush1.msra.mxu0 0.0
    %195 = vmatprep.subr.mxu0 0.0
    %196 = vmatpush1.msra.mxu0 0.0
    %197 = vmatprep.subr.mxu0 0.0
    %198 = vmatpush1.msra.mxu0 0.0
    %199 = vmatprep.subr.mxu0 0.0
    %200 = vmatpush1.msra.mxu0 0.0
    %201 = vmatprep.subr.mxu0 0.0
    %202 = vmatpush1.msra.mxu0 0.0
    %203 = vmatprep.subr.mxu0 0.0
    %204 = vmatpush1.msra.mxu0 0.0
    %205 = vmatprep.subr.mxu0 0.0
    %206 = vmatpush1.msra.mxu0 0.0
    %207 = vmatprep.subr.mxu0 0.0
    %208 = vmatpush1.msra.mxu0 0.0
    %209 = vmatprep.subr.mxu0 0.0
    %210 = vmatpush1.msra.mxu0 0.0
    %211 = vmatprep.subr.mxu0 0.0
    %212 = vmatpush1.msra.mxu0 0.0
    %213 = vmatprep.subr.mxu0 0.0
    %214 = vmatpush1.msra.mxu0 0.0
    %215 = vmatprep.subr.mxu0 0.0
    %216 = vmatpush1.msra.mxu0 %v91
    %217 = vmatprep.subr.mxu0 0.0
    %218 = vmatpush1.msra.mxu0 %v90
    %219 = vmatprep.subr.mxu0 0.0
    %220 = vmatpush1.msra.mxu0 %v89
    %221 = vmatprep.subr.mxu0 0.0
    %222 = vmatpush1.msra.mxu0 %v88
    %223 = vmatprep.subr.mxu0 0.0
    %224 = vmatpush2.msra.mxu0 0.0
    %225 = vmatprep.subr.mxu0 0.0
    %226 = vmatpush2.msra.mxu0 0.0
    %227 = vmatprep.subr.mxu0 0.0
    %228 = vmatpush2.msra.mxu0 0.0
    %229 = vmatprep.subr.mxu0 0.0
    %230 = vmatpush2.msra.mxu0 0.0
    %231 = vmatprep.subr.mxu0 0.0
    %232 = vmatpush2.msra.mxu0 0.0
    %233 = vmatprep.subr.mxu0 0.0
    %234 = vmatpush2.msra.mxu0 0.0
    %235 = vmatprep.subr.mxu0 0.0
    %236 = vmatpush2.msra.mxu0 0.0
    %237 = vmatprep.subr.mxu0 0.0
    %238 = vmatpush2.msra.mxu0 0.0
    %239 = vmatprep.subr.mxu0 0.0
    %240 = vmatpush2.msra.mxu0 0.0
    %241 = vmatprep.subr.mxu0 0.0
    %242 = vmatpush2.msra.mxu0 0.0
    %243 = vmatprep.subr.mxu0 0.0
    %244 = vmatpush2.msra.mxu0 0.0
    %245 = vmatprep.subr.mxu0 0.0
    %246 = vmatpush2.msra.mxu0 0.0
    %247 = vmatprep.subr.mxu0 0.0
    %248 = vmatpush2.msra.mxu0 0.0
    %249 = vmatprep.subr.mxu0 0.0
    %250 = vmatpush2.msra.mxu0 0.0
    %251 = vmatprep.subr.mxu0 0.0
    %252 = vmatpush2.msra.mxu0 0.0
    %253 = vmatprep.subr.mxu0 0.0
    %254 = vmatpush2.msra.mxu0 0.0
    %255 = vmatprep.mubr.f32.mxu0 0.0
    %256 = vmatmul.mubr.f32.gmra.mxu0 %v189
    %v257 = vpop.f32.mrf.mxu0
    %v258 = vadd.f32 0.0, %v257
    %v259 = vpop.f32.mrf.mxu0
    %260 = vdwg.mxu0
    %v262 = vrot.slane %v258, 1
    %v265 = vadd.f32 %v180, %v258
    %v266 = vadd.f32 %v185, %v262
    %v267 = vtanh.pop %v265
    %v268 = vtanh.pop %v266
    %v269 = vmul.f32 %v267, 0.5
    %v270 = vmul.f32 %v268, 0.5
    %v271 = vadd.f32 %v269, 0.5
    %v272 = vadd.f32 %v270, 0.5
    %v273 = vmul.f32 %v271, 0.0
    %v274 = vmul.f32 %v272, 0.0
    %277 = vrot.lane.b32.xlu0 %v267, 64
    %v278 = vpop.permute.xlu0 %277
    %279 = vrot.lane.b32.xlu0 %v268, 64
    %v280 = vpop.permute.xlu0 %279
    %v283 = vmul.f32 %v271, %v278
    %v284 = vmul.f32 %v272, %v280
    %287 = vrot.lane.b32.xlu0 %v283, 32
    %v288 = vpop.permute.xlu0 %287
    %289 = vrot.lane.b32.xlu0 %v284, 32
    %v290 = vpop.permute.xlu0 %289
    %v293 = vadd.f32 %v273, %v288
    %v294 = vadd.f32 %v274, %v290
    %v295 = vtanh.pop %v293
    %v296 = vtanh.pop %v294
    %299 = vrot.lane.b32.xlu0 %v295, 64
    %v300 = vpop.permute.xlu0 %299
    %301 = vrot.lane.b32.xlu0 %v296, 64
    %v302 = vpop.permute.xlu0 %301
    %v305 = vmul.f32 %v271, %v300
    %v306 = vmul.f32 %v272, %v302
    %v309 = vrot.slane %v306, 7
    %vm310 = vcmask 1041409
    %v311 = vsel %vm310, %v309, %v305
    %312 = vrot.lane.b32.xlu0 %v311, 32
    %v313 = vpop.permute.xlu0 %312
    %v314 = vsel %vm106, %v313, 0
    %316 = vmatprep.subr.mxu0 0.0
    %317 = vmatpush1.msra.mxu0 0.0
    %318 = vmatprep.subr.mxu0 0.0
    %319 = vmatpush1.msra.mxu0 0.0
    %320 = vmatprep.subr.mxu0 0.0
    %321 = vmatpush1.msra.mxu0 0.0
    %322 = vmatprep.subr.mxu0 0.0
    %323 = vmatpush1.msra.mxu0 0.0
    %324 = vmatprep.subr.mxu0 0.0
    %325 = vmatpush1.msra.mxu0 0.0
    %326 = vmatprep.subr.mxu0 0.0
    %327 = vmatpush1.msra.mxu0 0.0
    %328 = vmatprep.subr.mxu0 0.0
    %329 = vmatpush1.msra.mxu0 0.0
    %330 = vmatprep.subr.mxu0 0.0
    %331 = vmatpush1.msra.mxu0 0.0
    %332 = vmatprep.subr.mxu0 0.0
    %333 = vmatpush1.msra.mxu0 0.0
    %334 = vmatprep.subr.mxu0 0.0
    %335 = vmatpush1.msra.mxu0 0.0
    %336 = vmatprep.subr.mxu0 0.0
    %337 = vmatpush1.msra.mxu0 0.0
    %338 = vmatprep.subr.mxu0 0.0
    %339 = vmatpush1.msra.mxu0 0.0
    %340 = vmatprep.subr.mxu0 0.0
    %341 = vmatpush1.msra.mxu0 %v91
    %342 = vmatprep.subr.mxu0 0.0
    %343 = vmatpush1.msra.mxu0 %v90
    %344 = vmatprep.subr.mxu0 0.0
    %345 = vmatpush1.msra.mxu0 %v89
    %346 = vmatprep.subr.mxu0 0.0
    %347 = vmatpush1.msra.mxu0 %v88
    %348 = vmatprep.subr.mxu0 0.0
    %349 = vmatpush2.msra.mxu0 0.0
    %350 = vmatprep.subr.mxu0 0.0
    %351 = vmatpush2.msra.mxu0 0.0
    %352 = vmatprep.subr.mxu0 0.0
    %353 = vmatpush2.msra.mxu0 0.0
    %354 = vmatprep.subr.mxu0 0.0
    %355 = vmatpush2.msra.mxu0 0.0
    %356 = vmatprep.subr.mxu0 0.0
    %357 = vmatpush2.msra.mxu0 0.0
    %358 = vmatprep.subr.mxu0 0.0
    %359 = vmatpush2.msra.mxu0 0.0
    %360 = vmatprep.subr.mxu0 0.0
    %361 = vmatpush2.msra.mxu0 0.0
    %362 = vmatprep.subr.mxu0 0.0
    %363 = vmatpush2.msra.mxu0 0.0
    %364 = vmatprep.subr.mxu0 0.0
    %365 = vmatpush2.msra.mxu0 0.0
    %366 = vmatprep.subr.mxu0 0.0
    %367 = vmatpush2.msra.mxu0 0.0
    %368 = vmatprep.subr.mxu0 0.0
    %369 = vmatpush2.msra.mxu0 0.0
    %370 = vmatprep.subr.mxu0 0.0
    %371 = vmatpush2.msra.mxu0 0.0
    %372 = vmatprep.subr.mxu0 0.0
    %373 = vmatpush2.msra.mxu0 0.0
    %374 = vmatprep.subr.mxu0 0.0
    %375 = vmatpush2.msra.mxu0 0.0
    %376 = vmatprep.subr.mxu0 0.0
    %377 = vmatpush2.msra.mxu0 0.0
    %378 = vmatprep.subr.mxu0 0.0
    %379 = vmatpush2.msra.mxu0 0.0
    %380 = vmatprep.mubr.f32.mxu0 0.0
    %381 = vmatmul.mubr.f32.gmra.mxu0 %v314
    %v382 = vpop.f32.mrf.mxu0
    %v383 = vadd.f32 0.0, %v382
    %v384 = vpop.f32.mrf.mxu0
    %385 = vdwg.mxu0
    %v387 = vrot.slane %v383, 7
    %v390 = vadd.f32 %v180, %v387
    %v391 = vadd.f32 %v185, %v383
    %v392 = vtanh.pop %v390
    %v393 = vtanh.pop %v391
    %v394 = vmul.f32 %v392, 0.5
    %v395 = vmul.f32 %v393, 0.5
    %v396 = vadd.f32 %v394, 0.5
    %v397 = vadd.f32 %v395, 0.5
    %v400 = vrot.slane %v293, 7
    %v401 = vrot.slane %v294, 7
    %v404 = vmul.f32 %v396, %v400
    %v405 = vmul.f32 %v397, %v401
    %408 = vrot.lane.b32.xlu0 %v392, 64
    %v409 = vpop.permute.xlu0 %408
    %410 = vrot.lane.b32.xlu0 %v393, 64
    %v411 = vpop.permute.xlu0 %410
    %v414 = vmul.f32 %v396, %v409
    %v415 = vmul.f32 %v397, %v411
    %418 = vrot.lane.b32.xlu0 %v414, 32
    %v419 = vpop.permute.xlu0 %418
    %420 = vrot.lane.b32.xlu0 %v415, 32
    %v421 = vpop.permute.xlu0 %420
    %v424 = vadd.f32 %v404, %v419
    %v425 = vadd.f32 %v405, %v421
    %v426 = vtanh.pop %v424
    %v427 = vtanh.pop %v425
    %430 = vrot.lane.b32.xlu0 %v426, 64
    %v431 = vpop.permute.xlu0 %430
    %432 = vrot.lane.b32.xlu0 %v427, 64
    %v433 = vpop.permute.xlu0 %432
    %v436 = vmul.f32 %v396, %v431
    %v437 = vmul.f32 %v397, %v433
    %v440 = vrot.slane %v436, 1
    %v441 = vsel %vm310, %v437, %v440
    %442 = vrot.lane.b32.xlu0 %v441, 32
    %v443 = vpop.permute.xlu0 %442
    %v444 = vsel %vm106, %v443, 0
    %446 = vmatprep.subr.mxu0 0.0
    %447 = vmatpush1.msra.mxu0 0.0
    %448 = vmatprep.subr.mxu0 0.0
    %449 = vmatpush1.msra.mxu0 0.0
    %450 = vmatprep.subr.mxu0 0.0
    %451 = vmatpush1.msra.mxu0 0.0
    %452 = vmatprep.subr.mxu0 0.0
    %453 = vmatpush1.msra.mxu0 0.0
    %454 = vmatprep.subr.mxu0 0.0
    %455 = vmatpush1.msra.mxu0 0.0
    %456 = vmatprep.subr.mxu0 0.0
    %457 = vmatpush1.msra.mxu0 0.0
    %458 = vmatprep.subr.mxu0 0.0
    %459 = vmatpush1.msra.mxu0 0.0
    %460 = vmatprep.subr.mxu0 0.0
    %461 = vmatpush1.msra.mxu0 0.0
    %462 = vmatprep.subr.mxu0 0.0
    %463 = vmatpush1.msra.mxu0 0.0
    %464 = vmatprep.subr.mxu0 0.0
    %465 = vmatpush1.msra.mxu0 0.0
    %466 = vmatprep.subr.mxu0 0.0
    %467 = vmatpush1.msra.mxu0 0.0
    %468 = vmatprep.subr.mxu0 0.0
    %469 = vmatpush1.msra.mxu0 0.0
    %470 = vmatprep.subr.mxu0 0.0
    %471 = vmatpush1.msra.mxu0 %v91
    %472 = vmatprep.subr.mxu0 0.0
    %473 = vmatpush1.msra.mxu0 %v90
    %474 = vmatprep.subr.mxu0 0.0
    %475 = vmatpush1.msra.mxu0 %v89
    %476 = vmatprep.subr.mxu0 0.0
    %477 = vmatpush1.msra.mxu0 %v88
    %478 = vmatprep.subr.mxu0 0.0
    %479 = vmatpush2.msra.mxu0 0.0
    %480 = vmatprep.subr.mxu0 0.0
    %481 = vmatpush2.msra.mxu0 0.0
    %482 = vmatprep.subr.mxu0 0.0
    %483 = vmatpush2.msra.mxu0 0.0
    %484 = vmatprep.subr.mxu0 0.0
    %485 = vmatpush2.msra.mxu0 0.0
    %486 = vmatprep.subr.mxu0 0.0
    %487 = vmatpush2.msra.mxu0 0.0
    %488 = vmatprep.subr.mxu0 0.0
    %489 = vmatpush2.msra.mxu0 0.0
    %490 = vmatprep.subr.mxu0 0.0
    %491 = vmatpush2.msra.mxu0 0.0
    %492 = vmatprep.subr.mxu0 0.0
    %493 = vmatpush2.msra.mxu0 0.0
    %494 = vmatprep.subr.mxu0 0.0
    %495 = vmatpush2.msra.mxu0 0.0
    %496 = vmatprep.subr.mxu0 0.0
    %497 = vmatpush2.msra.mxu0 0.0
    %498 = vmatprep.subr.mxu0 0.0
    %499 = vmatpush2.msra.mxu0 0.0
    %500 = vmatprep.subr.mxu0 0.0
    %501 = vmatpush2.msra.mxu0 0.0
    %502 = vmatprep.subr.mxu0 0.0
    %503 = vmatpush2.msra.mxu0 0.0
    %504 = vmatprep.subr.mxu0 0.0
    %505 = vmatpush2.msra.mxu0 0.0
    %506 = vmatprep.subr.mxu0 0.0
    %507 = vmatpush2.msra.mxu0 0.0
    %508 = vmatprep.subr.mxu0 0.0
    %509 = vmatpush2.msra.mxu0 0.0
    %510 = vmatprep.mubr.f32.mxu0 0.0
    %511 = vmatmul.mubr.f32.gmra.mxu0 %v444
    %v512 = vpop.f32.mrf.mxu0
    %v513 = vadd.f32 0.0, %v512
    %v514 = vpop.f32.mrf.mxu0
    %515 = vdwg.mxu0
    %v517 = vrot.slane %v513, 6
    %v518 = vrot.slane %v513, 7
    %v521 = vadd.f32 %v180, %v517
    %v522 = vadd.f32 %v185, %v518
    %v523 = vtanh.pop %v521
    %v524 = vtanh.pop %v522
    %v525 = vmul.f32 %v523, 0.5
    %v526 = vmul.f32 %v524, 0.5
    %v527 = vadd.f32 %v525, 0.5
    %v528 = vadd.f32 %v526, 0.5
    %v531 = vrot.slane %v424, 7
    %v532 = vrot.slane %v425, 7
    %v535 = vmul.f32 %v527, %v531
    %v536 = vmul.f32 %v528, %v532
    %539 = vrot.lane.b32.xlu0 %v523, 64
    %v540 = vpop.permute.xlu0 %539
    %541 = vrot.lane.b32.xlu0 %v524, 64
    %v542 = vpop.permute.xlu0 %541
    %v545 = vmul.f32 %v527, %v540
    %v546 = vmul.f32 %v528, %v542
    %549 = vrot.lane.b32.xlu0 %v545, 32
    %v550 = vpop.permute.xlu0 %549
    %551 = vrot.lane.b32.xlu0 %v546, 32
    %v552 = vpop.permute.xlu0 %551
    %v555 = vadd.f32 %v535, %v550
    %v556 = vadd.f32 %v536, %v552
    %v557 = vtanh.pop %v555
    %v558 = vtanh.pop %v556
    %561 = vrot.lane.b32.xlu0 %v557, 64
    %v562 = vpop.permute.xlu0 %561
    %563 = vrot.lane.b32.xlu0 %v558, 64
    %v564 = vpop.permute.xlu0 %563
    %v567 = vmul.f32 %v527, %v562
    %v568 = vmul.f32 %v528, %v564
    %v571 = vrot.slane %v567, 2
    %v572 = vrot.slane %v568, 1
    %v573 = vsel %vm310, %v572, %v571
    %574 = vrot.lane.b32.xlu0 %v573, 32
    %v575 = vpop.permute.xlu0 %574
    %v576 = vsel %vm106, %v575, 0
    %578 = vmatprep.subr.mxu0 0.0
    %579 = vmatpush1.msra.mxu0 0.0
    %580 = vmatprep.subr.mxu0 0.0
    %581 = vmatpush1.msra.mxu0 0.0
    %582 = vmatprep.subr.mxu0 0.0
    %583 = vmatpush1.msra.mxu0 0.0
    %584 = vmatprep.subr.mxu0 0.0
    %585 = vmatpush1.msra.mxu0 0.0
    %586 = vmatprep.subr.mxu0 0.0
    %587 = vmatpush1.msra.mxu0 0.0
    %588 = vmatprep.subr.mxu0 0.0
    %589 = vmatpush1.msra.mxu0 0.0
    %590 = vmatprep.subr.mxu0 0.0
    %591 = vmatpush1.msra.mxu0 0.0
    %592 = vmatprep.subr.mxu0 0.0
    %593 = vmatpush1.msra.mxu0 0.0
    %594 = vmatprep.subr.mxu0 0.0
    %595 = vmatpush1.msra.mxu0 0.0
    %596 = vmatprep.subr.mxu0 0.0
    %597 = vmatpush1.msra.mxu0 0.0
    %598 = vmatprep.subr.mxu0 0.0
    %599 = vmatpush1.msra.mxu0 0.0
    %600 = vmatprep.subr.mxu0 0.0
    %601 = vmatpush1.msra.mxu0 0.0
    %602 = vmatprep.subr.mxu0 0.0
    %603 = vmatpush1.msra.mxu0 %v91
    %604 = vmatprep.subr.mxu0 0.0
    %605 = vmatpush1.msra.mxu0 %v90
    %606 = vmatprep.subr.mxu0 0.0
    %607 = vmatpush1.msra.mxu0 %v89
    %608 = vmatprep.subr.mxu0 0.0
    %609 = vmatpush1.msra.mxu0 %v88
    %610 = vmatprep.subr.mxu0 0.0
    %611 = vmatpush2.msra.mxu0 0.0
    %612 = vmatprep.subr.mxu0 0.0
    %613 = vmatpush2.msra.mxu0 0.0
    %614 = vmatprep.subr.mxu0 0.0
    %615 = vmatpush2.msra.mxu0 0.0
    %616 = vmatprep.subr.mxu0 0.0
    %617 = vmatpush2.msra.mxu0 0.0
    %618 = vmatprep.subr.mxu0 0.0
    %619 = vmatpush2.msra.mxu0 0.0
    %620 = vmatprep.subr.mxu0 0.0
    %621 = vmatpush2.msra.mxu0 0.0
    %622 = vmatprep.subr.mxu0 0.0
    %623 = vmatpush2.msra.mxu0 0.0
    %624 = vmatprep.subr.mxu0 0.0
    %625 = vmatpush2.msra.mxu0 0.0
    %626 = vmatprep.subr.mxu0 0.0
    %627 = vmatpush2.msra.mxu0 0.0
    %628 = vmatprep.subr.mxu0 0.0
    %629 = vmatpush2.msra.mxu0 0.0
    %630 = vmatprep.subr.mxu0 0.0
    %631 = vmatpush2.msra.mxu0 0.0
    %632 = vmatprep.subr.mxu0 0.0
    %633 = vmatpush2.msra.mxu0 0.0
    %634 = vmatprep.subr.mxu0 0.0
    %635 = vmatpush2.msra.mxu0 0.0
    %636 = vmatprep.subr.mxu0 0.0
    %637 = vmatpush2.msra.mxu0 0.0
    %638 = vmatprep.subr.mxu0 0.0
    %639 = vmatpush2.msra.mxu0 0.0
    %640 = vmatprep.subr.mxu0 0.0
    %641 = vmatpush2.msra.mxu0 0.0
    %642 = vmatprep.mubr.f32.mxu0 0.0
    %643 = vmatmul.mubr.f32.gmra.mxu0 %v576
    %v644 = vpop.f32.mrf.mxu0
    %v645 = vadd.f32 0.0, %v644
    %v646 = vpop.f32.mrf.mxu0
    %647 = vdwg.mxu0
    %v649 = vrot.slane %v645, 5
    %v650 = vrot.slane %v645, 6
    %v653 = vadd.f32 %v180, %v649
    %v654 = vadd.f32 %v185, %v650
    %v655 = vtanh.pop %v653
    %v656 = vtanh.pop %v654
    %v657 = vmul.f32 %v655, 0.5
    %v658 = vmul.f32 %v656, 0.5
    %v659 = vadd.f32 %v657, 0.5
    %v660 = vadd.f32 %v658, 0.5
    %v663 = vrot.slane %v555, 7
    %v664 = vrot.slane %v556, 7
    %v667 = vmul.f32 %v659, %v663
    %v668 = vmul.f32 %v660, %v664
    %671 = vrot.lane.b32.xlu0 %v655, 64
    %v672 = vpop.permute.xlu0 %671
    %673 = vrot.lane.b32.xlu0 %v656, 64
    %v674 = vpop.permute.xlu0 %673
    %v677 = vmul.f32 %v659, %v672
    %v678 = vmul.f32 %v660, %v674
    %681 = vrot.lane.b32.xlu0 %v677, 32
    %v682 = vpop.permute.xlu0 %681
    %683 = vrot.lane.b32.xlu0 %v678, 32
    %v684 = vpop.permute.xlu0 %683
    %v687 = vadd.f32 %v667, %v682
    %v688 = vadd.f32 %v668, %v684
    %v689 = vtanh.pop %v687
    %v690 = vtanh.pop %v688
    %693 = vrot.lane.b32.xlu0 %v689, 64
    %v694 = vpop.permute.xlu0 %693
    %695 = vrot.lane.b32.xlu0 %v690, 64
    %v696 = vpop.permute.xlu0 %695
    %v699 = vmul.f32 %v659, %v694
    %v700 = vmul.f32 %v660, %v696
    %v703 = vrot.slane %v699, 3
    %v704 = vrot.slane %v700, 2
    %v705 = vsel %vm310, %v704, %v703
    %706 = vrot.lane.b32.xlu0 %v705, 32
    %v707 = vpop.permute.xlu0 %706
    %v708 = vsel %vm106, %v707, 0
    %710 = vmatprep.subr.mxu0 0.0
    %711 = vmatpush1.msra.mxu0 0.0
    %712 = vmatprep.subr.mxu0 0.0
    %713 = vmatpush1.msra.mxu0 0.0
    %714 = vmatprep.subr.mxu0 0.0
    %715 = vmatpush1.msra.mxu0 0.0
    %716 = vmatprep.subr.mxu0 0.0
    %717 = vmatpush1.msra.mxu0 0.0
    %718 = vmatprep.subr.mxu0 0.0
    %719 = vmatpush1.msra.mxu0 0.0
    %720 = vmatprep.subr.mxu0 0.0
    %721 = vmatpush1.msra.mxu0 0.0
    %722 = vmatprep.subr.mxu0 0.0
    %723 = vmatpush1.msra.mxu0 0.0
    %724 = vmatprep.subr.mxu0 0.0
    %725 = vmatpush1.msra.mxu0 0.0
    %726 = vmatprep.subr.mxu0 0.0
    %727 = vmatpush1.msra.mxu0 0.0
    %728 = vmatprep.subr.mxu0 0.0
    %729 = vmatpush1.msra.mxu0 0.0
    %730 = vmatprep.subr.mxu0 0.0
    %731 = vmatpush1.msra.mxu0 0.0
    %732 = vmatprep.subr.mxu0 0.0
    %733 = vmatpush1.msra.mxu0 0.0
    %734 = vmatprep.subr.mxu0 0.0
    %735 = vmatpush1.msra.mxu0 %v91
    %736 = vmatprep.subr.mxu0 0.0
    %737 = vmatpush1.msra.mxu0 %v90
    %738 = vmatprep.subr.mxu0 0.0
    %739 = vmatpush1.msra.mxu0 %v89
    %740 = vmatprep.subr.mxu0 0.0
    %741 = vmatpush1.msra.mxu0 %v88
    %742 = vmatprep.subr.mxu0 0.0
    %743 = vmatpush2.msra.mxu0 0.0
    %744 = vmatprep.subr.mxu0 0.0
    %745 = vmatpush2.msra.mxu0 0.0
    %746 = vmatprep.subr.mxu0 0.0
    %747 = vmatpush2.msra.mxu0 0.0
    %748 = vmatprep.subr.mxu0 0.0
    %749 = vmatpush2.msra.mxu0 0.0
    %750 = vmatprep.subr.mxu0 0.0
    %751 = vmatpush2.msra.mxu0 0.0
    %752 = vmatprep.subr.mxu0 0.0
    %753 = vmatpush2.msra.mxu0 0.0
    %754 = vmatprep.subr.mxu0 0.0
    %755 = vmatpush2.msra.mxu0 0.0
    %756 = vmatprep.subr.mxu0 0.0
    %757 = vmatpush2.msra.mxu0 0.0
    %758 = vmatprep.subr.mxu0 0.0
    %759 = vmatpush2.msra.mxu0 0.0
    %760 = vmatprep.subr.mxu0 0.0
    %761 = vmatpush2.msra.mxu0 0.0
    %762 = vmatprep.subr.mxu0 0.0
    %763 = vmatpush2.msra.mxu0 0.0
    %764 = vmatprep.subr.mxu0 0.0
    %765 = vmatpush2.msra.mxu0 0.0
    %766 = vmatprep.subr.mxu0 0.0
    %767 = vmatpush2.msra.mxu0 0.0
    %768 = vmatprep.subr.mxu0 0.0
    %769 = vmatpush2.msra.mxu0 0.0
    %770 = vmatprep.subr.mxu0 0.0
    %771 = vmatpush2.msra.mxu0 0.0
    %772 = vmatprep.subr.mxu0 0.0
    %773 = vmatpush2.msra.mxu0 0.0
    %774 = vmatprep.mubr.f32.mxu0 0.0
    %775 = vmatmul.mubr.f32.gmra.mxu0 %v708
    %v776 = vpop.f32.mrf.mxu0
    %v777 = vadd.f32 0.0, %v776
    %v778 = vpop.f32.mrf.mxu0
    %779 = vdwg.mxu0
    %v781 = vrot.slane %v777, 4
    %v782 = vrot.slane %v777, 5
    %v785 = vadd.f32 %v180, %v781
    %v786 = vadd.f32 %v185, %v782
    %v787 = vtanh.pop %v785
    %v788 = vtanh.pop %v786
    %v789 = vmul.f32 %v787, 0.5
    %v790 = vmul.f32 %v788, 0.5
    %v791 = vadd.f32 %v789, 0.5
    %v792 = vadd.f32 %v790, 0.5
    %v795 = vrot.slane %v687, 7
    %v796 = vrot.slane %v688, 7
    %v799 = vmul.f32 %v791, %v795
    %v800 = vmul.f32 %v792, %v796
    %803 = vrot.lane.b32.xlu0 %v787, 64
    %v804 = vpop.permute.xlu0 %803
    %805 = vrot.lane.b32.xlu0 %v788, 64
    %v806 = vpop.permute.xlu0 %805
    %v809 = vmul.f32 %v791, %v804
    %v810 = vmul.f32 %v792, %v806
    %813 = vrot.lane.b32.xlu0 %v809, 32
    %v814 = vpop.permute.xlu0 %813
    %815 = vrot.lane.b32.xlu0 %v810, 32
    %v816 = vpop.permute.xlu0 %815
    %v819 = vadd.f32 %v799, %v814
    %v820 = vadd.f32 %v800, %v816
    %v821 = vtanh.pop %v819
    %v822 = vtanh.pop %v820
    %825 = vrot.lane.b32.xlu0 %v821, 64
    %v826 = vpop.permute.xlu0 %825
    %827 = vrot.lane.b32.xlu0 %v822, 64
    %v828 = vpop.permute.xlu0 %827
    %v831 = vmul.f32 %v791, %v826
    %v832 = vmul.f32 %v792, %v828
    %v835 = vrot.slane %v831, 4
    %v836 = vrot.slane %v832, 3
    %v837 = vsel %vm310, %v836, %v835
    %838 = vrot.lane.b32.xlu0 %v837, 32
    %v839 = vpop.permute.xlu0 %838
    %v840 = vsel %vm106, %v839, 0
    %842 = vmatprep.subr.mxu0 0.0
    %843 = vmatpush1.msra.mxu0 0.0
    %844 = vmatprep.subr.mxu0 0.0
    %845 = vmatpush1.msra.mxu0 0.0
    %846 = vmatprep.subr.mxu0 0.0
    %847 = vmatpush1.msra.mxu0 0.0
    %848 = vmatprep.subr.mxu0 0.0
    %849 = vmatpush1.msra.mxu0 0.0
    %850 = vmatprep.subr.mxu0 0.0
    %851 = vmatpush1.msra.mxu0 0.0
    %852 = vmatprep.subr.mxu0 0.0
    %853 = vmatpush1.msra.mxu0 0.0
    %854 = vmatprep.subr.mxu0 0.0
    %855 = vmatpush1.msra.mxu0 0.0
    %856 = vmatprep.subr.mxu0 0.0
    %857 = vmatpush1.msra.mxu0 0.0
    %858 = vmatprep.subr.mxu0 0.0
    %859 = vmatpush1.msra.mxu0 0.0
    %860 = vmatprep.subr.mxu0 0.0
    %861 = vmatpush1.msra.mxu0 0.0
    %862 = vmatprep.subr.mxu0 0.0
    %863 = vmatpush1.msra.mxu0 0.0
    %864 = vmatprep.subr.mxu0 0.0
    %865 = vmatpush1.msra.mxu0 0.0
    %866 = vmatprep.subr.mxu0 0.0
    %867 = vmatpush1.msra.mxu0 %v91
    %868 = vmatprep.subr.mxu0 0.0
    %869 = vmatpush1.msra.mxu0 %v90
    %870 = vmatprep.subr.mxu0 0.0
    %871 = vmatpush1.msra.mxu0 %v89
    %872 = vmatprep.subr.mxu0 0.0
    %873 = vmatpush1.msra.mxu0 %v88
    %874 = vmatprep.subr.mxu0 0.0
    %875 = vmatpush2.msra.mxu0 0.0
    %876 = vmatprep.subr.mxu0 0.0
    %877 = vmatpush2.msra.mxu0 0.0
    %878 = vmatprep.subr.mxu0 0.0
    %879 = vmatpush2.msra.mxu0 0.0
    %880 = vmatprep.subr.mxu0 0.0
    %881 = vmatpush2.msra.mxu0 0.0
    %882 = vmatprep.subr.mxu0 0.0
    %883 = vmatpush2.msra.mxu0 0.0
    %884 = vmatprep.subr.mxu0 0.0
    %885 = vmatpush2.msra.mxu0 0.0
    %886 = vmatprep.subr.mxu0 0.0
    %887 = vmatpush2.msra.mxu0 0.0
    %888 = vmatprep.subr.mxu0 0.0
    %889 = vmatpush2.msra.mxu0 0.0
    %890 = vmatprep.subr.mxu0 0.0
    %891 = vmatpush2.msra.mxu0 0.0
    %892 = vmatprep.subr.mxu0 0.0
    %893 = vmatpush2.msra.mxu0 0.0
    %894 = vmatprep.subr.mxu0 0.0
    %895 = vmatpush2.msra.mxu0 0.0
    %896 = vmatprep.subr.mxu0 0.0
    %897 = vmatpush2.msra.mxu0 0.0
    %898 = vmatprep.subr.mxu0 0.0
    %899 = vmatpush2.msra.mxu0 0.0
    %900 = vmatprep.subr.mxu0 0.0
    %901 = vmatpush2.msra.mxu0 0.0
    %902 = vmatprep.subr.mxu0 0.0
    %903 = vmatpush2.msra.mxu0 0.0
    %904 = vmatprep.subr.mxu0 0.0
    %905 = vmatpush2.msra.mxu0 0.0
    %906 = vmatprep.mubr.f32.mxu0 0.0
    %907 = vmatmul.mubr.f32.gmra.mxu0 %v840
    %v908 = vpop.f32.mrf.mxu0
    %v909 = vadd.f32 0.0, %v908
    %v910 = vpop.f32.mrf.mxu0
    %911 = vdwg.mxu0
    %v913 = vrot.slane %v909, 3
    %v914 = vrot.slane %v909, 4
    %v917 = vadd.f32 %v180, %v913
    %v918 = vadd.f32 %v185, %v914
    %v919 = vtanh.pop %v917
    %v920 = vtanh.pop %v918
    %v921 = vmul.f32 %v919, 0.5
    %v922 = vmul.f32 %v920, 0.5
    %v923 = vadd.f32 %v921, 0.5
    %v924 = vadd.f32 %v922, 0.5
    %v927 = vrot.slane %v819, 7
    %v928 = vrot.slane %v820, 7
    %v931 = vmul.f32 %v923, %v927
    %v932 = vmul.f32 %v924, %v928
    %935 = vrot.lane.b32.xlu0 %v919, 64
    %v936 = vpop.permute.xlu0 %935
    %937 = vrot.lane.b32.xlu0 %v920, 64
    %v938 = vpop.permute.xlu0 %937
    %v941 = vmul.f32 %v923, %v936
    %v942 = vmul.f32 %v924, %v938
    %945 = vrot.lane.b32.xlu0 %v941, 32
    %v946 = vpop.permute.xlu0 %945
    %947 = vrot.lane.b32.xlu0 %v942, 32
    %v948 = vpop.permute.xlu0 %947
    %v951 = vadd.f32 %v931, %v946
    %v952 = vadd.f32 %v932, %v948
    %v953 = vtanh.pop %v951
    %v954 = vtanh.pop %v952
    %957 = vrot.lane.b32.xlu0 %v953, 64
    %v958 = vpop.permute.xlu0 %957
    %959 = vrot.lane.b32.xlu0 %v954, 64
    %v960 = vpop.permute.xlu0 %959
    %v963 = vmul.f32 %v923, %v958
    %v964 = vmul.f32 %v924, %v960
    %v967 = vrot.slane %v963, 5
    %v968 = vrot.slane %v964, 4
    %v969 = vsel %vm310, %v968, %v967
    %970 = vrot.lane.b32.xlu0 %v969, 32
    %v971 = vpop.permute.xlu0 %970
    %v972 = vsel %vm106, %v971, 0
    %974 = vmatprep.subr.mxu0 0.0
    %975 = vmatpush1.msra.mxu0 0.0
    %976 = vmatprep.subr.mxu0 0.0
    %977 = vmatpush1.msra.mxu0 0.0
    %978 = vmatprep.subr.mxu0 0.0
    %979 = vmatpush1.msra.mxu0 0.0
    %980 = vmatprep.subr.mxu0 0.0
    %981 = vmatpush1.msra.mxu0 0.0
    %982 = vmatprep.subr.mxu0 0.0
    %983 = vmatpush1.msra.mxu0 0.0
    %984 = vmatprep.subr.mxu0 0.0
    %985 = vmatpush1.msra.mxu0 0.0
    %986 = vmatprep.subr.mxu0 0.0
    %987 = vmatpush1.msra.mxu0 0.0
    %988 = vmatprep.subr.mxu0 0.0
    %989 = vmatpush1.msra.mxu0 0.0
    %990 = vmatprep.subr.mxu0 0.0
    %991 = vmatpush1.msra.mxu0 0.0
    %992 = vmatprep.subr.mxu0 0.0
    %993 = vmatpush1.msra.mxu0 0.0
    %994 = vmatprep.subr.mxu0 0.0
    %995 = vmatpush1.msra.mxu0 0.0
    %996 = vmatprep.subr.mxu0 0.0
    %997 = vmatpush1.msra.mxu0 0.0
    %998 = vmatprep.subr.mxu0 0.0
    %999 = vmatpush1.msra.mxu0 %v91
    %1000 = vmatprep.subr.mxu0 0.0
    %1001 = vmatpush1.msra.mxu0 %v90
    %1002 = vmatprep.subr.mxu0 0.0
    %1003 = vmatpush1.msra.mxu0 %v89
    %1004 = vmatprep.subr.mxu0 0.0
    %1005 = vmatpush1.msra.mxu0 %v88
    %1006 = vmatprep.subr.mxu0 0.0
    %1007 = vmatpush2.msra.mxu0 0.0
    %1008 = vmatprep.subr.mxu0 0.0
    %1009 = vmatpush2.msra.mxu0 0.0
    %1010 = vmatprep.subr.mxu0 0.0
    %1011 = vmatpush2.msra.mxu0 0.0
    %1012 = vmatprep.subr.mxu0 0.0
    %1013 = vmatpush2.msra.mxu0 0.0
    %1014 = vmatprep.subr.mxu0 0.0
    %1015 = vmatpush2.msra.mxu0 0.0
    %1016 = vmatprep.subr.mxu0 0.0
    %1017 = vmatpush2.msra.mxu0 0.0
    %1018 = vmatprep.subr.mxu0 0.0
    %1019 = vmatpush2.msra.mxu0 0.0
    %1020 = vmatprep.subr.mxu0 0.0
    %1021 = vmatpush2.msra.mxu0 0.0
    %1022 = vmatprep.subr.mxu0 0.0
    %1023 = vmatpush2.msra.mxu0 0.0
    %1024 = vmatprep.subr.mxu0 0.0
    %1025 = vmatpush2.msra.mxu0 0.0
    %1026 = vmatprep.subr.mxu0 0.0
    %1027 = vmatpush2.msra.mxu0 0.0
    %1028 = vmatprep.subr.mxu0 0.0
    %1029 = vmatpush2.msra.mxu0 0.0
    %1030 = vmatprep.subr.mxu0 0.0
    %1031 = vmatpush2.msra.mxu0 0.0
    %1032 = vmatprep.subr.mxu0 0.0
    %1033 = vmatpush2.msra.mxu0 0.0
    %1034 = vmatprep.subr.mxu0 0.0
    %1035 = vmatpush2.msra.mxu0 0.0
    %1036 = vmatprep.subr.mxu0 0.0
    %1037 = vmatpush2.msra.mxu0 0.0
    %1038 = vmatprep.mubr.f32.mxu0 0.0
    %1039 = vmatmul.mubr.f32.gmra.mxu0 %v972
    %v1040 = vpop.f32.mrf.mxu0
    %v1041 = vadd.f32 0.0, %v1040
    %v1042 = vpop.f32.mrf.mxu0
    %1043 = vdwg.mxu0
    %v1045 = vrot.slane %v1041, 2
    %v1046 = vrot.slane %v1041, 3
    %v1049 = vadd.f32 %v180, %v1045
    %v1050 = vadd.f32 %v185, %v1046
    %v1051 = vtanh.pop %v1049
    %v1052 = vtanh.pop %v1050
    %v1053 = vmul.f32 %v1051, 0.5
    %v1054 = vmul.f32 %v1052, 0.5
    %v1055 = vadd.f32 %v1053, 0.5
    %v1056 = vadd.f32 %v1054, 0.5
    %v1059 = vrot.slane %v951, 7
    %v1060 = vrot.slane %v952, 7
    %v1063 = vmul.f32 %v1055, %v1059
    %v1064 = vmul.f32 %v1056, %v1060
    %1067 = vrot.lane.b32.xlu0 %v1051, 64
    %v1068 = vpop.permute.xlu0 %1067
    %1069 = vrot.lane.b32.xlu0 %v1052, 64
    %v1070 = vpop.permute.xlu0 %1069
    %v1073 = vmul.f32 %v1055, %v1068
    %v1074 = vmul.f32 %v1056, %v1070
    %1077 = vrot.lane.b32.xlu0 %v1073, 32
    %v1078 = vpop.permute.xlu0 %1077
    %1079 = vrot.lane.b32.xlu0 %v1074, 32
    %v1080 = vpop.permute.xlu0 %1079
    %v1083 = vadd.f32 %v1063, %v1078
    %v1084 = vadd.f32 %v1064, %v1080
    %v1085 = vtanh.pop %v1083
    %v1086 = vtanh.pop %v1084
    %1089 = vrot.lane.b32.xlu0 %v1085, 64
    %v1090 = vpop.permute.xlu0 %1089
    %1091 = vrot.lane.b32.xlu0 %v1086, 64
    %v1092 = vpop.permute.xlu0 %1091
    %v1095 = vmul.f32 %v1055, %v1090
    %v1096 = vmul.f32 %v1056, %v1092
    %v1099 = vrot.slane %v1095, 6
    %v1100 = vrot.slane %v1096, 5
    %v1101 = vsel %vm310, %v1100, %v1099
    %1102 = vrot.lane.b32.xlu0 %v1101, 32
    %v1103 = vpop.permute.xlu0 %1102
    %v1104 = vsel %vm106, %v1103, 0
    %1106 = vmatprep.subr.mxu0 0.0
    %1107 = vmatpush1.msra.mxu0 0.0
    %1108 = vmatprep.subr.mxu0 0.0
    %1109 = vmatpush1.msra.mxu0 0.0
    %1110 = vmatprep.subr.mxu0 0.0
    %1111 = vmatpush1.msra.mxu0 0.0
    %1112 = vmatprep.subr.mxu0 0.0
    %1113 = vmatpush1.msra.mxu0 0.0
    %1114 = vmatprep.subr.mxu0 0.0
    %1115 = vmatpush1.msra.mxu0 0.0
    %1116 = vmatprep.subr.mxu0 0.0
    %1117 = vmatpush1.msra.mxu0 0.0
    %1118 = vmatprep.subr.mxu0 0.0
    %1119 = vmatpush1.msra.mxu0 0.0
    %1120 = vmatprep.subr.mxu0 0.0
    %1121 = vmatpush1.msra.mxu0 0.0
    %1122 = vmatprep.subr.mxu0 0.0
    %1123 = vmatpush1.msra.mxu0 0.0
    %1124 = vmatprep.subr.mxu0 0.0
    %1125 = vmatpush1.msra.mxu0 0.0
    %1126 = vmatprep.subr.mxu0 0.0
    %1127 = vmatpush1.msra.mxu0 0.0
    %1128 = vmatprep.subr.mxu0 0.0
    %1129 = vmatpush1.msra.mxu0 0.0
    %1130 = vmatprep.subr.mxu0 0.0
    %1131 = vmatpush1.msra.mxu0 %v91
    %1132 = vmatprep.subr.mxu0 0.0
    %1133 = vmatpush1.msra.mxu0 %v90
    %1134 = vmatprep.subr.mxu0 0.0
    %1135 = vmatpush1.msra.mxu0 %v89
    %1136 = vmatprep.subr.mxu0 0.0
    %1137 = vmatpush1.msra.mxu0 %v88
    %1138 = vmatprep.subr.mxu0 0.0
    %1139 = vmatpush2.msra.mxu0 0.0
    %1140 = vmatprep.subr.mxu0 0.0
    %1141 = vmatpush2.msra.mxu0 0.0
    %1142 = vmatprep.subr.mxu0 0.0
    %1143 = vmatpush2.msra.mxu0 0.0
    %1144 = vmatprep.subr.mxu0 0.0
    %1145 = vmatpush2.msra.mxu0 0.0
    %1146 = vmatprep.subr.mxu0 0.0
    %1147 = vmatpush2.msra.mxu0 0.0
    %1148 = vmatprep.subr.mxu0 0.0
    %1149 = vmatpush2.msra.mxu0 0.0
    %1150 = vmatprep.subr.mxu0 0.0
    %1151 = vmatpush2.msra.mxu0 0.0
    %1152 = vmatprep.subr.mxu0 0.0
    %1153 = vmatpush2.msra.mxu0 0.0
    %1154 = vmatprep.subr.mxu0 0.0
    %1155 = vmatpush2.msra.mxu0 0.0
    %1156 = vmatprep.subr.mxu0 0.0
    %1157 = vmatpush2.msra.mxu0 0.0
    %1158 = vmatprep.subr.mxu0 0.0
    %1159 = vmatpush2.msra.mxu0 0.0
    %1160 = vmatprep.subr.mxu0 0.0
    %1161 = vmatpush2.msra.mxu0 0.0
    %1162 = vmatprep.subr.mxu0 0.0
    %1163 = vmatpush2.msra.mxu0 0.0
    %1164 = vmatprep.subr.mxu0 0.0
    %1165 = vmatpush2.msra.mxu0 0.0
    %1166 = vmatprep.subr.mxu0 0.0
    %1167 = vmatpush2.msra.mxu0 0.0
    %1168 = vmatprep.subr.mxu0 0.0
    %1169 = vmatpush2.msra.mxu0 0.0
    %1170 = vmatprep.mubr.f32.mxu0 0.0
    %1171 = vmatmul.mubr.f32.gmra.mxu0 %v1104
    %v1172 = vpop.f32.mrf.mxu0
    %v1173 = vadd.f32 0.0, %v1172
    %v1174 = vpop.f32.mrf.mxu0
    %1175 = vdwg.mxu0
    %v1177 = vrot.slane %v1173, 1
    %v1178 = vrot.slane %v1173, 2
    %v1181 = vadd.f32 %v180, %v1177
    %v1182 = vadd.f32 %v185, %v1178
    %v1183 = vtanh.pop %v1181
    %v1184 = vtanh.pop %v1182
    %v1185 = vmul.f32 %v1183, 0.5
    %v1186 = vmul.f32 %v1184, 0.5
    %v1187 = vadd.f32 %v1185, 0.5
    %v1188 = vadd.f32 %v1186, 0.5
    %v1191 = vrot.slane %v1083, 7
    %v1192 = vrot.slane %v1084, 7
    %v1195 = vmul.f32 %v1187, %v1191
    %v1196 = vmul.f32 %v1188, %v1192
    %1199 = vrot.lane.b32.xlu0 %v1183, 64
    %v1200 = vpop.permute.xlu0 %1199
    %1201 = vrot.lane.b32.xlu0 %v1184, 64
    %v1202 = vpop.permute.xlu0 %1201
    %v1205 = vmul.f32 %v1187, %v1200
    %v1206 = vmul.f32 %v1188, %v1202
    %1209 = vrot.lane.b32.xlu0 %v1205, 32
    %v1210 = vpop.permute.xlu0 %1209
    %1211 = vrot.lane.b32.xlu0 %v1206, 32
    %v1212 = vpop.permute.xlu0 %1211
    %v1215 = vadd.f32 %v1195, %v1210
    %v1216 = vadd.f32 %v1196, %v1212
    %v1217 = vtanh.pop %v1215
    %v1218 = vtanh.pop %v1216
    %1221 = vrot.lane.b32.xlu0 %v1217, 64
    %v1222 = vpop.permute.xlu0 %1221
    %1223 = vrot.lane.b32.xlu0 %v1218, 64
    %v1224 = vpop.permute.xlu0 %1223
    %v1227 = vmul.f32 %v1187, %v1222
    %v1228 = vmul.f32 %v1188, %v1224
    %1230 = vrot.lane.b32.xlu0 %v441, 64
    %v1231 = vpop.permute.xlu0 %1230
    %1233 = vrot.lane.b32.xlu0 %v573, 96
    %v1234 = vpop.permute.xlu0 %1233
    %1238 = vrot.lane.b32.xlu0 %v969, 64
    %v1239 = vpop.permute.xlu0 %1238
    %1241 = vrot.lane.b32.xlu0 %v1101, 96
    %v1242 = vpop.permute.xlu0 %1241
    %v1246 = vrot.slane %v1227, 7
    %v1247 = vrot.slane %v1228, 6
    %v1248 = vsel %vm310, %v1247, %v1246
    %v1250 = vsel %vm106, %v313, %v1231
    %vm1251 = vcmask 523264
    %v1252 = vsel %vm1251, %v1250, %v1234
    %vm1253 = vcmask 785408
    %v1254 = vsel %vm1253, %v1252, %v705
    %v1255 = vsel %vm106, %v839, %v1239
    %v1256 = vsel %vm1251, %v1255, %v1242
    %v1257 = vsel %vm1253, %v1256, %v1248
    %v1258 = vld [vmem:[%s2] sm:$0xf]
    %v1261 = vunpack.c.l.s4 1983009808
    %v1262 = vunpack.c.0.s8 %v1261
    %v1263 = vlaneseq
    %v1264 = vshrl.u32 %v1263, 7
    %v1265 = vsub.s32 %v1262, %v1264
    %v1266 = vrot.slane %v1258, %v1265
    %v1267 = vcombine.high %v1266, %v1266
    %v1270 = vmul.f32 %v1254, %v1266
    %v1271 = vmul.f32 %v1257, %v1267
    %v1274 = vcombine.low %v1270, %v1271
    %v1276 = vunpack.c.l.s4 1983009808
    %v1277 = vunpack.c.0.s8 %v1276
    %v1278 = vlaneseq
    %v1279 = vshrl.u32 %v1278, 7
    %v1280 = vsub.s32 %v1277, %v1279
    %v1281 = vrot.slane %v1274, %v1280
    %1283 = vst [vmem:[#allocation11] sm:$0xf] %v1281
    %v1285 = vlaneseq
    %v1286 = vshrl.u32 %v1285, 7
    %v1287 = vsub.s32 0, %v1286
    %v1288 = vrot.slane %v92, %v1287
    %1289 = vrot.lane.b32.xlu0 %v1288, 96
    %v1290 = vpop.permute.xlu0 %1289
    %v1292 = vmul.f32 %v305, %v1290
    %v1293 = vmul.f32 %v306, %v1290
    %v1296 = vrot.slane %v1293, 7
    %v1297 = vsel %vm310, %v1296, %v1292
    %1298 = vrot.lane.b32.xlu0 %v1297, 32
    %v1299 = vpop.permute.xlu0 %1298
    %vm1301 = vcmask 254976
    %v1302 = vsel %vm1301, %v1299, 0.0
    %1303 = vadd.xlane.f32.xlu0 %v1302
    %v1304 = vpop.xlane.xlu0 %1303
    %v1305 = vmul.f32 %v436, %v1290
    %v1306 = vmul.f32 %v437, %v1290
    %v1309 = vrot.slane %v1306, 7
    %vm1310 = vcmask 1042434
    %v1311 = vsel %vm1310, %v1309, %v1305
    %1312 = vrot.lane.b32.xlu0 %v1311, 32
    %v1313 = vpop.permute.xlu0 %1312
    %vm1315 = vcmask 256001
    %v1316 = vsel %vm1315, %v1313, 0.0
    %1317 = vadd.xlane.f32.xlu0 %v1316
    %v1318 = vpop.xlane.xlu0 %1317
    %v1319 = vmul.f32 %v567, %v1290
    %v1320 = vmul.f32 %v568, %v1290
    %v1323 = vrot.slane %v1320, 7
    %vm1324 = vcmask 1043459
    %v1325 = vsel %vm1324, %v1323, %v1319
    %1326 = vrot.lane.b32.xlu0 %v1325, 32
    %v1327 = vpop.permute.xlu0 %1326
    %vm1329 = vcmask 257026
    %v1330 = vsel %vm1329, %v1327, 0.0
    %1331 = vadd.xlane.f32.xlu0 %v1330
    %v1332 = vpop.xlane.xlu0 %1331
    %v1333 = vmul.f32 %v699, %v1290
    %v1334 = vmul.f32 %v700, %v1290
    %v1337 = vrot.slane %v1334, 7
    %vm1338 = vcmask 1044484
    %v1339 = vsel %vm1338, %v1337, %v1333
    %1340 = vrot.lane.b32.xlu0 %v1339, 32
    %v1341 = vpop.permute.xlu0 %1340
    %vm1343 = vcmask 258051
    %v1344 = vsel %vm1343, %v1341, 0.0
    %1345 = vadd.xlane.f32.xlu0 %v1344
    %v1346 = vpop.xlane.xlu0 %1345
    %v1347 = vmul.f32 %v831, %v1290
    %v1348 = vmul.f32 %v832, %v1290
    %v1351 = vrot.slane %v1348, 7
    %vm1352 = vcmask 1045509
    %v1353 = vsel %vm1352, %v1351, %v1347
    %1354 = vrot.lane.b32.xlu0 %v1353, 32
    %v1355 = vpop.permute.xlu0 %1354
    %vm1357 = vcmask 259076
    %v1358 = vsel %vm1357, %v1355, 0.0
    %1359 = vadd.xlane.f32.xlu0 %v1358
    %v1360 = vpop.xlane.xlu0 %1359
    %v1361 = vmul.f32 %v963, %v1290
    %v1362 = vmul.f32 %v964, %v1290
    %v1365 = vrot.slane %v1362, 7
    %vm1366 = vcmask 1046534
    %v1367 = vsel %vm1366, %v1365, %v1361
    %1368 = vrot.lane.b32.xlu0 %v1367, 32
    %v1369 = vpop.permute.xlu0 %1368
    %vm1371 = vcmask 260101
    %v1372 = vsel %vm1371, %v1369, 0.0
    %1373 = vadd.xlane.f32.xlu0 %v1372
    %v1374 = vpop.xlane.xlu0 %1373
    %v1375 = vmul.f32 %v1095, %v1290
    %v1376 = vmul.f32 %v1096, %v1290
    %v1379 = vrot.slane %v1376, 7
    %vm1380 = vcmask 1047559
    %v1381 = vsel %vm1380, %v1379, %v1375
    %1382 = vrot.lane.b32.xlu0 %v1381, 32
    %v1383 = vpop.permute.xlu0 %1382
    %vm1385 = vcmask 261126
    %v1386 = vsel %vm1385, %v1383, 0.0
    %1387 = vadd.xlane.f32.xlu0 %v1386
    %v1388 = vpop.xlane.xlu0 %1387
    %v1389 = vmul.f32 %v1227, %v1290
    %v1390 = vmul.f32 %v1228, %v1290
    %v1393 = vrot.slane %v1390, 7
    %1394 = vrot.lane.b32.xlu0 %v1389, 32
    %v1395 = vpop.permute.xlu0 %1394
    %1396 = vrot.lane.b32.xlu0 %v1393, 32
    %v1397 = vpop.permute.xlu0 %1396
    %vm1400 = vcmask 261127
    %v1401 = vsel %vm1400, %v1395, 0.0
    %1402 = vadd.xlane.f32.xlu0 %v1401
    %v1403 = vpop.xlane.xlu0 %1402
    %vm1404 = vcmask 253952
    %v1405 = vsel %vm1404, %v1397, 0.0
    %1406 = vadd.xlane.f32.xlu0 %v1405
    %v1407 = vpop.xlane.xlu0 %1406
    %v1409 = vrot.slane %v1318, 1
    %v1412 = vrot.slane %v1332, 2
    %v1415 = vrot.slane %v1346, 3
    %v1418 = vrot.slane %v1360, 4
    %v1421 = vrot.slane %v1374, 5
    %v1424 = vrot.slane %v1388, 6
    %vm1428 = vcmask 1040384
    %v1429 = vrot.slane %v1403, 7
    %v1430 = vrot.slane %v1407, 7
    %v1431 = vsel %vm1428, %v1429, %v1430
    %vm1433 = vcmask 7168
    %v1434 = vsel %vm1433, %v1304, %v1409
    %vm1435 = vcmask 15360
    %v1436 = vsel %vm1435, %v1434, %v1412
    %vm1437 = vcmask 23552
    %v1438 = vsel %vm1437, %v1436, %v1415
    %vm1439 = vcmask 31744
    %v1440 = vsel %vm1439, %v1438, %v1418
    %vm1441 = vcmask 39936
    %v1442 = vsel %vm1441, %v1440, %v1421
    %vm1443 = vcmask 48128
    %v1444 = vsel %vm1443, %v1442, %v1424
    %vm1445 = vcmask 56320
    %v1446 = vsel %vm1445, %v1444, %v1431
    %v1447 = vld [vmem:[#allocation6] sm:$0x3]
    %v1448 = vmul.f32 %v1446, %v1447
    %v1449 = vld [vmem:[#allocation2] sm:$0x1]
    %v1451 = vlaneseq
    %v1452 = vshrl.u32 %v1451, 7
    %v1453 = vsub.s32 0, %v1452
    %v1454 = vrot.slane %v1449, %v1453
    %1455 = vset.pattern.permute.xlu0 0
    %1456 = vperm.xlu0 %1455, %v1454
    %v1457 = vpop.permute.xlu0 %1456
    %v1459 = vadd.f32 %v1448, %v1457
    %v1460 = vxor.u32 %v1459, 2147483648
    %v1461 = vmul.f32 %v1460, 1.442695
    %v1462 = vpow.pop %v1461
    %v1463 = vadd.f32 %v1462, 1.0
    %v1464 = vrcp.pop %v1463
    %v1465 = vmul.f32 1.0, %v1464
    %vm1466 = vcmask 58368
    %1467 = vst.msk [vmem:[#allocation12] sm:$0x3] %vm1466, %v1465
    // Predicated region
    $region50: #{tpu_custom_call.1} parent=1 // pred_check
      _
    $region51: #{tpu_custom_call.1} parent=1 // pred_check_branch
      %1469 = sbr.rel (0) target = $region53
    $region52: #{tpu_custom_call.1} parent=1 // pred_region
      %s1471 = ssub.s32 64, 64
      %1472 = vsyncadd [#allocation5], %s1471
      %s1474 = sshll.u32 [#allocation11], 4
      %s1475 = int_to_ptr.vmem [resolvable:$true] %s1474
      %1477 = dma.vmem_to_hbm [thread:$0]  %s1475, 64, %s8, [#allocation5]
    $region53: #{tpu_custom_call.1} parent=1 // pred_fallthru
      _
    // Predicated region
    $region54: #{tpu_custom_call.1} parent=1 // pred_check
      _
    $region55: #{tpu_custom_call.1} parent=1 // pred_check_branch
      %1479 = sbr.rel (0) target = $region57
    $region56: #{tpu_custom_call.1} parent=1 // pred_region
      %s1481 = ssub.s32 32, 32
      %1482 = vsyncadd [#allocation13], %s1481
      %s1484 = sshll.u32 [#allocation12], 4
      %s1485 = int_to_ptr.vmem [resolvable:$true] %s1484
      %1487 = dma.vmem_to_hbm [thread:$0]  %s1485, 32, %s9, [#allocation13]
    $region57: #{tpu_custom_call.1} parent=1 // pred_fallthru
      _
    // Predicated region
    $region58: #{tpu_custom_call.1} parent=1 // pred_check
      _
    $region59: #{tpu_custom_call.1} parent=1 // pred_check_branch
      %1489 = sbr.rel (0) target = $region61
    $region60: #{tpu_custom_call.1} parent=1 // pred_region
      %1490 = dma.done [#allocation5], 64
    $region61: #{tpu_custom_call.1} parent=1 // pred_fallthru
      _
    // Predicated region
    $region62: #{tpu_custom_call.1} parent=1 // pred_check
      _
    $region63: #{tpu_custom_call.1} parent=1 // pred_check_branch
      %1492 = sbr.rel (0) target = $region65
    $region64: #{tpu_custom_call.1} parent=1 // pred_region
      %1493 = dma.done [#allocation13], 32
    $region65: #{tpu_custom_call.1} parent=1 // pred_fallthru
      _
    %1494 = vsyncpa [#allocation4], 1
    %1495 = vsyncpa [#allocation7], 1
    %1496 = vsyncpa [#allocation10], 1
    %1497 = vsyncpa [#allocation5], 1
    %1498 = vsyncpa [#allocation13], 1

</llo_original>
